<compile_context>
chip_gen: v7x
topology: tpu7x:2x2x1
jax: 0.10.0
libtpu: 0.0.40
codegen_flags: <defaults>
</compile_context>

<pallas_src>
import functools

import jax
import jax.numpy as jnp
from jax import lax
from jax.experimental import pallas as pl
from jax.experimental.pallas import tpu as pltpu

CIN = 320          # int(320 * ratio), ratio = 1.0
COUT = 1280        # int(1280 * ratio)
BN_EPS = 1e-5


def _aux_head_kernel(x_ref, w_ref, shift_ref, o_ref, *, inv_hw):
    # x_ref:     (bb, CIN, HW) f32   activation in native NCHW layout (HW=H*W)
    # w_ref:     (CIN, COUT)   bf16  1x1 conv weight with BN scale folded in
    # shift_ref: (1, COUT)     f32   folded shift: beta + (bias - mean) * scale
    # o_ref:     (bb, 1, COUT) f32   global-average-pooled output
    bb = x_ref.shape[0]
    for b in range(bb):                                    # bb is small & static
        x = x_ref[b].astype(jnp.bfloat16)                  # (CIN, HW), VPU cast
        y = lax.dot_general(                               # MXU, transposed LHS
            x, w_ref[...],
            dimension_numbers=(((0,), (0,)), ((), ())),
            preferred_element_type=jnp.float32)            # (HW, COUT) f32
        y = jnp.clip(y + shift_ref[...], 0.0, 6.0)         # BN shift + ReLU6
        # adaptive_avg_pool2d(1): sum over HW (sublanes) * 1/HW, lane-dense row.
        o_ref[b] = jnp.sum(y, axis=0, keepdims=True) * inv_hw


def _pick_batch_block(n, hw):
    """Images per grid step.  Always a divisor of n (no padding/partial blocks)."""
    # VMEM budget: x double-buffer (bb*CIN*HW*4*2 B) plus one (HW, COUT) f32
    # matmul intermediate must stay well inside the ~32 MiB scoped default
    # (and the 64 MiB physical VMEM on v7x).
    per_image = CIN * hw * 4 * 2
    cap = max(1, (8 * 1024 * 1024 - hw * COUT * 4) // per_image)
    cap = min(cap, 8)                 # enough to amortize ~0.35 us per-step cost
    if n >= 2:
        # Keep >= 2 grid steps so both v7x TensorCores get work.  This no longer
        # shrinks the per-matmul M (each image is its own matmul), so it costs
        # only one extra pipeline step on single-TC v5e/v6e.
        cap = min(cap, n // 2)
    cap = max(cap, 1)
    bb = 1
    for d in range(1, cap + 1):
        if n % d == 0:
            bb = d
    return bb


@jax.jit
def auxiliary_classifier_forward(x_nchw, conv_w, conv_b, bn_gamma, bn_beta,
                                 bn_mean, bn_var):
    """x_nchw: (N, 320, H, W) float32  ->  (N, 1280, 1, 1) float32."""
    n, cin, h, w = x_nchw.shape
    assert cin == CIN and conv_w.shape == (COUT, CIN, 1, 1)
    hw = h * w

    # Contiguous merge of the trailing spatial dims: metadata-only, no HBM pass.
    x = x_nchw.reshape(n, cin, hw)

    # Fold conv bias + eval-mode BatchNorm into the weight and a per-channel shift.
    scale = bn_gamma * lax.rsqrt(bn_var + BN_EPS)                      # (COUT,)
    w_mat = (conv_w.reshape(COUT, CIN).T * scale[None, :]).astype(jnp.bfloat16)
    shift = (bn_beta + (conv_b - bn_mean) * scale).reshape(1, COUT)
    shift = shift.astype(jnp.float32)

    bb = _pick_batch_block(n, hw)
    kernel = functools.partial(_aux_head_kernel, inv_hw=float(1.0 / hw))

    out = pl.pallas_call(
        kernel,
        out_shape=jax.ShapeDtypeStruct((n, 1, COUT), jnp.float32),
        grid=(n // bb,),
        in_specs=[
            pl.BlockSpec((bb, CIN, hw), lambda i: (i, 0, 0)),
            pl.BlockSpec((CIN, COUT), lambda i: (0, 0)),   # DMA'd once (const idx)
            pl.BlockSpec((1, COUT), lambda i: (0, 0)),     # DMA'd once (const idx)
        ],
        out_specs=pl.BlockSpec((bb, 1, COUT), lambda i: (i, 0, 0)),
        compiler_params=pltpu.CompilerParams(
            dimension_semantics=("parallel",),
        ),
    )(x, w_mat, shift)

    # TODO(synk): self.conv2 exists in the module but is unused in forward().
    return out.reshape(n, COUT, 1, 1)


def _reference(x_nchw, conv_w, conv_b, bn_gamma, bn_beta, bn_mean, bn_var):
    # Mirrors the kernel's numerics: BN scale folded into a bf16 weight, bf16
    # activations, f32 accumulation, f32 shift / ReLU6 / mean.
    n, cin, h, w = x_nchw.shape
    scale = bn_gamma * lax.rsqrt(bn_var + BN_EPS)
    w_mat = (conv_w.reshape(COUT, CIN).T * scale[None, :])
    w_mat = w_mat.astype(jnp.bfloat16).astype(jnp.float32)
    shift = bn_beta + (conv_b - bn_mean) * scale
    x = x_nchw.reshape(n, cin, h * w).astype(jnp.bfloat16).astype(jnp.float32)
    y = jnp.einsum("nch,co->nho", x, w_mat)
    y = jnp.clip(y + shift[None, None, :], 0.0, 6.0)
    return jnp.mean(y, axis=1).reshape(n, COUT, 1, 1)


if __name__ == "__main__":
    key = jax.random.PRNGKey(0)
    k_x, k_w, k_b, k_g, k_be, k_m, k_v = jax.random.split(key, 7)

    N, H, W = 2, 8, 8
    x = jax.random.normal(k_x, (N, CIN, H, W), dtype=jnp.float32)

    # Deterministic synthetic parameters (shapes match the PyTorch module).
    conv_w = jax.random.normal(k_w, (COUT, CIN, 1, 1), dtype=jnp.float32) * 0.05
    conv_b = jax.random.normal(k_b, (COUT,), dtype=jnp.float32) * 0.1
    bn_gamma = 1.0 + 0.1 * jax.random.normal(k_g, (COUT,), dtype=jnp.float32)
    bn_beta = 0.1 * jax.random.normal(k_be, (COUT,), dtype=jnp.float32)
    bn_mean = 0.1 * jax.random.normal(k_m, (COUT,), dtype=jnp.float32)
    bn_var = jnp.abs(1.0 + 0.1 * jax.random.normal(k_v, (COUT,), dtype=jnp.float32))

    out = auxiliary_classifier_forward(x, conv_w, conv_b, bn_gamma, bn_beta,
                                       bn_mean, bn_var)
    out = jax.block_until_ready(out)
    assert out.shape == (N, COUT, 1, 1)

    ref = _reference(x, conv_w, conv_b, bn_gamma, bn_beta, bn_mean, bn_var)
    err = float(jnp.max(jnp.abs(out - ref)))
    assert jnp.allclose(out, ref, atol=1e-2, rtol=1e-2), f"max abs err = {err}"

    print("KERNEL_OK")
</pallas_src>

<mosaic_0001>
module attributes {stable_mosaic.version = 11 : i64} {
  func.func @_aux_head_kernel(%arg0: i32, %arg1: memref<1x320x64xf32, #tpu.memory_space<vmem>>, %arg2: memref<320x1280xbf16, #tpu.memory_space<vmem>>, %arg3: memref<1x1280xf32, #tpu.memory_space<vmem>>, %arg4: memref<1x1x1280xf32, #tpu.memory_space<vmem>>) attributes {dimension_semantics = [#tpu.dimension_semantics<parallel>], iteration_bounds = array<i64: 2>, scalar_prefetch = 0 : i64, scratch_operands = 0 : i64, tpu.core_type = #tpu.core_type<tc>, window_params = [{transform_indices = @transform_0, window_bounds = array<i64: 1, 320, 64>}, {pipeline_mode = #tpu.pipeline_mode<synchronous>, transform_indices = @transform_1, window_bounds = array<i64: 320, 1280>}, {pipeline_mode = #tpu.pipeline_mode<synchronous>, transform_indices = @transform_2, window_bounds = array<i64: 1, 1280>}, {transform_indices = @transform_3, window_bounds = array<i64: 1, 1, 1280>}]} {
    %c0 = arith.constant 0 : index
    %c0_0 = arith.constant 0 : index
    %c0_1 = arith.constant 0 : index
    %0 = vector.load %arg1[%c0, %c0_0, %c0_1] : memref<1x320x64xf32, #tpu.memory_space<vmem>>, vector<1x320x64xf32>
    %1 = vector.shape_cast %0 : vector<1x320x64xf32> to vector<320x64xf32>
    %2 = arith.truncf %1 : vector<320x64xf32> to vector<320x64xbf16>
    %c0_2 = arith.constant 0 : index
    %c0_3 = arith.constant 0 : index
    %3 = vector.load %arg2[%c0_2, %c0_3] : memref<320x1280xbf16, #tpu.memory_space<vmem>>, vector<320x1280xbf16>
    %cst = arith.constant dense<0.000000e+00> : vector<64x1280xf32>
    %4 = tpu.matmul %2, %3, %cst {dimension_numbers = #tpu.dot_dimension_numbers<[0], [0], [1], [1], [0, 1, 1, 1], [], []>} : vector<320x64xbf16>, vector<320x1280xbf16>, vector<64x1280xf32> -> vector<64x1280xf32>
    %c0_4 = arith.constant 0 : index
    %c0_5 = arith.constant 0 : index
    %5 = vector.load %arg3[%c0_4, %c0_5] : memref<1x1280xf32, #tpu.memory_space<vmem>>, vector<1x1280xf32>
    %6 = vector.broadcast %5 : vector<1x1280xf32> to vector<64x1280xf32>
    %7 = arith.addf %4, %6 : vector<64x1280xf32>
    %cst_6 = arith.constant 0.000000e+00 : f32
    %cst_7 = arith.constant 6.000000e+00 : f32
    %8 = vector.broadcast %cst_6 : f32 to vector<64x1280xf32>
    %9 = arith.maximumf %8, %7 : vector<64x1280xf32>
    %10 = vector.broadcast %cst_7 : f32 to vector<64x1280xf32>
    %11 = arith.minimumf %10, %9 : vector<64x1280xf32>
    %cst_8 = arith.constant dense<0.000000e+00> : vector<1280xf32>
    %12 = vector.multi_reduction <add>, %11, %cst_8 [0] : vector<64x1280xf32> to vector<1280xf32>
    %13 = vector.shape_cast %12 : vector<1280xf32> to vector<1x1280xf32>
    %cst_9 = arith.constant 1.562500e-02 : f32
    %14 = vector.broadcast %cst_9 : f32 to vector<1x1280xf32>
    %15 = arith.mulf %13, %14 : vector<1x1280xf32>
    %c0_10 = arith.constant 0 : index
    %c0_11 = arith.constant 0 : index
    %c0_12 = arith.constant 0 : index
    %16 = vector.load %arg4[%c0_10, %c0_11, %c0_12] : memref<1x1x1280xf32, #tpu.memory_space<vmem>>, vector<1x1x1280xf32>
    %17 = vector.shape_cast %16 : vector<1x1x1280xf32> to vector<1x1280xf32>
    %18 = vector.shape_cast %15 : vector<1x1280xf32> to vector<1x1x1280xf32>
    tpu.vector_store %arg4[%c0_10, %c0_11, %c0_12], %18 {strides = array<i32>} : memref<1x1x1280xf32, #tpu.memory_space<vmem>>, vector<1x1x1280xf32>,
    return
  }
  func.func @transform_0(%arg0: i32) -> (i32, i32, i32) {
    %c0_i32 = arith.constant 0 : i32
    %c0_i32_0 = arith.constant 0 : i32
    %c0_i32_1 = arith.constant 0 : i32
    return %arg0, %c0_i32, %c0_i32_0 : i32, i32, i32
  }
  func.func @transform_1(%arg0: i32) -> (i32, i32) {
    %c0_i32 = arith.constant 0 : i32
    %c0_i32_0 = arith.constant 0 : i32
    %c0_i32_1 = arith.constant 0 : i32
    return %c0_i32, %c0_i32_0 : i32, i32
  }
  func.func @transform_2(%arg0: i32) -> (i32, i32) {
    %c0_i32 = arith.constant 0 : i32
    %c0_i32_0 = arith.constant 0 : i32
    %c0_i32_1 = arith.constant 0 : i32
    return %c0_i32, %c0_i32_0 : i32, i32
  }
  func.func @transform_3(%arg0: i32) -> (i32, i32, i32) {
    %c0_i32 = arith.constant 0 : i32
    %c0_i32_0 = arith.constant 0 : i32
    %c0_i32_1 = arith.constant 0 : i32
    return %arg0, %c0_i32, %c0_i32_0 : i32, i32, i32
  }
}

</mosaic_0001>

<llo_original>
// kernel: auxiliary_classifier_forward.1
$region0: #{auxiliary_classifier_forward.1}
  #allocation0 [shape = 'u32[]', space=smem, size = 0x4, offset = 0x4, fixed_abs, tag = 'smem constant byte address 0x4 - core index']
  #allocation1 [shape = 'u32[144,128]{1,0:T(1,128)}', space=vmem, size = 0x12000, scoped, tag = 'internal scratch']
  %s0 = inlined_call_operand.vmem [shape: f32[2,320,64], index: 0, kind: input, shape index: {}]
  %s1 = inlined_call_operand.vmem [shape: bf16[320,1280], index: 1, kind: input, shape index: {}]
  %s2 = inlined_call_operand.vmem [shape: f32[1,1280], index: 2, kind: input, shape index: {}]
  %s3 = inlined_call_operand.hbm [shape: f32[2,1,1280], index: 3, kind: output, shape index: {}]
  %s4 = sld [smem:[#allocation0]]
  $region45: #{auxiliary_classifier_forward.1} parent=0
    _
  %s6 = ssub.s32 1, %s4
  %s7 = scalar_select 0, %s6, %s4
  $region1: #{auxiliary_classifier_forward.1} parent=0
    #allocation2 [shape = 'u8[10240]{0}', space=vmem, size = 0x2800, scoped, tag = 'output window, operand 0']
    #allocation3 [shape = 's32[2]{0}', space=sflag, size = 0x8, scoped, tag = 'scoped memory for auxiliary_classifier_forward.1']
    %8 = vsyncpa [#allocation3], 0
    %s9 = scalar_lea.sflag [#allocation3], 1
    %10 = vsyncpa %s9, 0
    loop: start=0, step=1, limit=4
    $region2: #{auxiliary_classifier_forward.1} parent=1 // loop_pre_header
      _
    $region3: #{auxiliary_classifier_forward.1} parent=1 // loop_header
      %s12 = sphi 0, %s16
      %p13 = scmp.ge.s32.totalorder %s12, 4
      %s22 = sphi 0, %s24
      %s25 = sphi 0, %s22
      %s26 = sphi 0, %s25
      %s42 = sphi 0, %s26
      %s46 = sphi 0, %s46
      %s48 = sphi 0, %s46
      %s49 = sphi 0, %s48
      %s63 = sphi 0, %s49
      %s67 = sphi 0, %s67
      %s69 = sphi 0, %s67
      %s70 = sphi 0, %s69
      %s84 = sphi 0, %s70
      %s90 = sphi 0, %s92
      %s93 = sphi 0, %s90
      %s94 = sphi 0, %s93
      %s110 = sphi 0, %s94
    $region4: #{auxiliary_classifier_forward.1} parent=1 // loop_header_branch
      %15 = sbr.rel (%p13) target = $region8
    $region5: #{auxiliary_classifier_forward.1} parent=1 // loop_body
      %s17 = ssub.s32 %s12, 1
      %s18 = ssub.s32 %s12, 2
      %s19 = sadd.s32 %s12, 1
      %s20 = ssub.s32 %s12, %s19
      %p21 = scmp.eq.s32.totalorder %s20, 0
      %s23 = sadd.s32 %s22, 1
      %s24 = scalar_select %p21, %s22, %s23
      %p27 = pneg %p21
      %p28 = scmp.eq.s32.totalorder %s12, 1
      %p29 = por %p27, %p28
      %p30 = scmp.ne.s32.totalorder %s22, %s25
      %p31 = scmp.eq.s32.totalorder %s12, 0
      %p32 = por %p30, %p31
      %p33 = scmp.ne.s32.totalorder %s22, %s25
      %p34 = scmp.eq.s32.totalorder %s17, 1
      %p35 = por %p33, %p34
      %p36 = scmp.ne.s32.totalorder %s25, %s26
      %p37 = scmp.eq.s32.totalorder %s17, 0
      %p38 = por %p36, %p37
      %p39 = scmp.ne.s32.totalorder %s25, %s26
      %p40 = scmp.eq.s32.totalorder %s18, 1
      %p41 = por %p39, %p40
      %p43 = scmp.ne.s32.totalorder %s26, %s42
      %p44 = scmp.eq.s32.totalorder %s18, 0
      %p45 = por %p43, %p44
      %s47 = sadd.s32 %s46, 1
      %p50 = scmp.eq.s32.totalorder %s12, 1
      %p51 = scmp.ne.s32.totalorder %s46, %s48
      %p52 = scmp.eq.s32.totalorder %s12, 0
      %p53 = por %p51, %p52
      %p54 = scmp.ne.s32.totalorder %s46, %s48
      %p55 = scmp.eq.s32.totalorder %s17, 1
      %p56 = por %p54, %p55
      %p57 = scmp.ne.s32.totalorder %s48, %s49
      %p58 = scmp.eq.s32.totalorder %s17, 0
      %p59 = por %p57, %p58
      %p60 = scmp.ne.s32.totalorder %s48, %s49
      %p61 = scmp.eq.s32.totalorder %s18, 1
      %p62 = por %p60, %p61
      %p64 = scmp.ne.s32.totalorder %s49, %s63
      %p65 = scmp.eq.s32.totalorder %s18, 0
      %p66 = por %p64, %p65
      %s68 = sadd.s32 %s67, 1
      %p71 = scmp.eq.s32.totalorder %s12, 1
      %p72 = scmp.ne.s32.totalorder %s67, %s69
      %p73 = scmp.eq.s32.totalorder %s12, 0
      %p74 = por %p72, %p73
      %p75 = scmp.ne.s32.totalorder %s67, %s69
      %p76 = scmp.eq.s32.totalorder %s17, 1
      %p77 = por %p75, %p76
      %p78 = scmp.ne.s32.totalorder %s69, %s70
      %p79 = scmp.eq.s32.totalorder %s17, 0
      %p80 = por %p78, %p79
      %p81 = scmp.ne.s32.totalorder %s69, %s70
      %p82 = scmp.eq.s32.totalorder %s18, 1
      %p83 = por %p81, %p82
      %p85 = scmp.ne.s32.totalorder %s70, %s84
      %p86 = scmp.eq.s32.totalorder %s18, 0
      %p87 = por %p85, %p86
      %s88 = ssub.s32 %s12, %s19
      %p89 = scmp.eq.s32.totalorder %s88, 0
      %s91 = sadd.s32 %s90, 1
      %s92 = scalar_select %p89, %s90, %s91
      %p95 = pneg %p89
      %p96 = scmp.eq.s32.totalorder %s12, 1
      %p97 = por %p95, %p96
      %p98 = scmp.ne.s32.totalorder %s90, %s93
      %p99 = scmp.eq.s32.totalorder %s12, 0
      %p100 = por %p98, %p99
      %p101 = scmp.ne.s32.totalorder %s90, %s93
      %p102 = scmp.eq.s32.totalorder %s17, 1
      %p103 = por %p101, %p102
      %p104 = scmp.ne.s32.totalorder %s93, %s94
      %p105 = scmp.eq.s32.totalorder %s17, 0
      %p106 = por %p104, %p105
      %p107 = scmp.ne.s32.totalorder %s93, %s94
      %p108 = scmp.eq.s32.totalorder %s18, 1
      %p109 = por %p107, %p108
      %p111 = scmp.ne.s32.totalorder %s94, %s110
      %p112 = scmp.eq.s32.totalorder %s18, 0
      %p113 = por %p111, %p112
      %p114 = scmp.le.s32.totalorder 1, %s12
      %p115 = scmp.lt.s32.totalorder %s12, 3
      %p116 = pnand %p114, %p115
      %p117 = pneg %p116
      // Predicated region
      $region9: #{auxiliary_classifier_forward.1} parent=5 // pred_check
        _
      $region10: #{auxiliary_classifier_forward.1} parent=5 // pred_check_branch
        %119 = sbr.rel (%p116) target = $region12
      $region11: #{auxiliary_classifier_forward.1} parent=5 // pred_region
        %s120 = ssub.s32 %s12, 1
        // Predicated region
        $region13: #{auxiliary_classifier_forward.1} parent=11 // pred_check
          %p121 = pneg %p59
        $region14: #{auxiliary_classifier_forward.1} parent=11 // pred_check_branch
          %123 = sbr.rel (%p121) target = $region16
        $region15: #{auxiliary_classifier_forward.1} parent=11 // pred_region
          _
        $region16: #{auxiliary_classifier_forward.1} parent=11 // pred_fallthru
          _
        // Predicated region
        $region17: #{auxiliary_classifier_forward.1} parent=11 // pred_check
          %p124 = pneg %p80
        $region18: #{auxiliary_classifier_forward.1} parent=11 // pred_check_branch
          %126 = sbr.rel (%p124) target = $region20
        $region19: #{auxiliary_classifier_forward.1} parent=11 // pred_region
          _
        $region20: #{auxiliary_classifier_forward.1} parent=11 // pred_fallthru
          _
      $region12: #{auxiliary_classifier_forward.1} parent=5 // pred_fallthru
        _
      %p127 = scmp.lt.s32.totalorder %s12, 2
      // Predicated region
      $region21: #{auxiliary_classifier_forward.1} parent=5 // pred_check
        %p128 = pneg %p127
      $region22: #{auxiliary_classifier_forward.1} parent=5 // pred_check_branch
        %130 = sbr.rel (%p128) target = $region24
      $region23: #{auxiliary_classifier_forward.1} parent=5 // pred_region
        // Predicated region
        $region25: #{auxiliary_classifier_forward.1} parent=23 // pred_check
          %p131 = pneg %p32
        $region26: #{auxiliary_classifier_forward.1} parent=23 // pred_check_branch
          %133 = sbr.rel (%p131) target = $region28
        $region27: #{auxiliary_classifier_forward.1} parent=23 // pred_region
          %p134 = scmp.lt.s32.totalorder %s12, 1
          %s135 = scalar_select %p134, %s12, 1
          %s136 = smul.addr %s135, 40
          %s137 = smul.addr %s136, 8
          %s138 = scalar_lea.vmem %s0, %s137
        $region28: #{auxiliary_classifier_forward.1} parent=23 // pred_fallthru
          _
      $region24: #{auxiliary_classifier_forward.1} parent=5 // pred_fallthru
        _
      %p139 = scmp.le.s32.totalorder 1, %s12
      %p140 = scmp.lt.s32.totalorder %s12, 3
      %p141 = pnand %p139, %p140
      %p142 = pneg %p141
      // Predicated region
      $region29: #{auxiliary_classifier_forward.1} parent=5 // pred_check
        _
      $region30: #{auxiliary_classifier_forward.1} parent=5 // pred_check_branch
        %144 = sbr.rel (%p141) target = $region32
      $region31: #{auxiliary_classifier_forward.1} parent=5 // pred_region
        %s145 = ssub.s32 %s12, 1
        %p146 = scmp.lt.s32.totalorder %s17, 1
        %s147 = scalar_select %p146, %s17, 1
        %s148 = smul.addr %s147, 40
        %s149 = smul.addr %s148, 8
        %s150 = scalar_lea.vmem %s0, %s149
        %p151 = pneg %p38
        %p152 = pneg %p35
        %p153 = pneg %p59
        %p154 = pneg %p56
        %p155 = pneg %p80
        %p156 = pneg %p77
        %p157 = pneg %p106
        %p158 = pneg %p103
        %s159 = sand.u32 %s93, 1
        %s160 = scalar_lea.sflag [#allocation3], %s159
        %s161 = sand.u32 %s93, 1
        %s162 = smul.addr %s161, 10
        %s163 = scalar_lea.vmem [#allocation2], %s162
        %p164 = scmp.lt.s32.totalorder %s17, 1
        %s165 = scalar_select %p164, %s17, 1
        %s166 = smul.addr %s165, 40
        %s167 = smul.addr %s166, 8
        %s168 = scalar_lea.vmem %s0, %s167
        %v170 = vld [vmem:[%s168] sm:$0xff]
        %v171 = vld [vmem:[%s168 + $0x8] sm:$0xff]
        %v172 = vld [vmem:[%s168 + $0x10] sm:$0xff]
        %v173 = vld [vmem:[%s168 + $0x18] sm:$0xff]
        %v174 = vld [vmem:[%s168 + $0x20] sm:$0xff]
        %v175 = vld [vmem:[%s168 + $0x28] sm:$0xff]
        %v176 = vld [vmem:[%s168 + $0x30] sm:$0xff]
        %v177 = vld [vmem:[%s168 + $0x38] sm:$0xff]
        %v178 = vld [vmem:[%s168 + $0x40] sm:$0xff]
        %v179 = vld [vmem:[%s168 + $0x48] sm:$0xff]
        %v180 = vld [vmem:[%s168 + $0x50] sm:$0xff]
        %v181 = vld [vmem:[%s168 + $0x58] sm:$0xff]
        %v182 = vld [vmem:[%s168 + $0x60] sm:$0xff]
        %v183 = vld [vmem:[%s168 + $0x68] sm:$0xff]
        %v184 = vld [vmem:[%s168 + $0x70] sm:$0xff]
        %v185 = vld [vmem:[%s168 + $0x78] sm:$0xff]
        %v186 = vld [vmem:[%s168 + $0x80] sm:$0xff]
        %v187 = vld [vmem:[%s168 + $0x88] sm:$0xff]
        %v188 = vld [vmem:[%s168 + $0x90] sm:$0xff]
        %v189 = vld [vmem:[%s168 + $0x98] sm:$0xff]
        %v190 = vld [vmem:[%s168 + $0xa0] sm:$0xff]
        %v191 = vld [vmem:[%s168 + $0xa8] sm:$0xff]
        %v192 = vld [vmem:[%s168 + $0xb0] sm:$0xff]
        %v193 = vld [vmem:[%s168 + $0xb8] sm:$0xff]
        %v194 = vld [vmem:[%s168 + $0xc0] sm:$0xff]
        %v195 = vld [vmem:[%s168 + $0xc8] sm:$0xff]
        %v196 = vld [vmem:[%s168 + $0xd0] sm:$0xff]
        %v197 = vld [vmem:[%s168 + $0xd8] sm:$0xff]
        %v198 = vld [vmem:[%s168 + $0xe0] sm:$0xff]
        %v199 = vld [vmem:[%s168 + $0xe8] sm:$0xff]
        %v200 = vld [vmem:[%s168 + $0xf0] sm:$0xff]
        %v201 = vld [vmem:[%s168 + $0xf8] sm:$0xff]
        %v202 = vld [vmem:[%s168 + $0x100] sm:$0xff]
        %v203 = vld [vmem:[%s168 + $0x108] sm:$0xff]
        %v204 = vld [vmem:[%s168 + $0x110] sm:$0xff]
        %v205 = vld [vmem:[%s168 + $0x118] sm:$0xff]
        %v206 = vld [vmem:[%s168 + $0x120] sm:$0xff]
        %v207 = vld [vmem:[%s168 + $0x128] sm:$0xff]
        %v208 = vld [vmem:[%s168 + $0x130] sm:$0xff]
        %v209 = vld [vmem:[%s168 + $0x138] sm:$0xff]
        %v210 = vpack.c.bf16 %v171, %v170
        %v211 = vpack.c.bf16 %v173, %v172
        %v212 = vpack.c.bf16 %v175, %v174
        %v213 = vpack.c.bf16 %v177, %v176
        %v214 = vpack.c.bf16 %v179, %v178
        %v215 = vpack.c.bf16 %v181, %v180
        %v216 = vpack.c.bf16 %v183, %v182
        %v217 = vpack.c.bf16 %v185, %v184
        %v218 = vpack.c.bf16 %v187, %v186
        %v219 = vpack.c.bf16 %v189, %v188
        %v220 = vpack.c.bf16 %v191, %v190
        %v221 = vpack.c.bf16 %v193, %v192
        %v222 = vpack.c.bf16 %v195, %v194
        %v223 = vpack.c.bf16 %v197, %v196
        %v224 = vpack.c.bf16 %v199, %v198
        %v225 = vpack.c.bf16 %v201, %v200
        %v226 = vpack.c.bf16 %v203, %v202
        %v227 = vpack.c.bf16 %v205, %v204
        %v228 = vpack.c.bf16 %v207, %v206
        %v229 = vpack.c.bf16 %v209, %v208
        %v230 = vld [vmem:[%s1] sm:$0xff]
        %v231 = vld [vmem:[%s1 + $0x8] sm:$0xff]
        %v232 = vld [vmem:[%s1 + $0x10] sm:$0xff]
        %v233 = vld [vmem:[%s1 + $0x18] sm:$0xff]
        %v234 = vld [vmem:[%s1 + $0x20] sm:$0xff]
        %v235 = vld [vmem:[%s1 + $0x28] sm:$0xff]
        %v236 = vld [vmem:[%s1 + $0x30] sm:$0xff]
        %v237 = vld [vmem:[%s1 + $0x38] sm:$0xff]
        %v238 = vld [vmem:[%s1 + $0x40] sm:$0xff]
        %v239 = vld [vmem:[%s1 + $0x48] sm:$0xff]
        %v240 = vld [vmem:[%s1 + $0x50] sm:$0xff]
        %v241 = vld [vmem:[%s1 + $0x58] sm:$0xff]
        %v242 = vld [vmem:[%s1 + $0x60] sm:$0xff]
        %v243 = vld [vmem:[%s1 + $0x68] sm:$0xff]
        %v244 = vld [vmem:[%s1 + $0x70] sm:$0xff]
        %v245 = vld [vmem:[%s1 + $0x78] sm:$0xff]
        %v246 = vld [vmem:[%s1 + $0x80] sm:$0xff]
        %v247 = vld [vmem:[%s1 + $0x88] sm:$0xff]
        %v248 = vld [vmem:[%s1 + $0x90] sm:$0xff]
        %v249 = vld [vmem:[%s1 + $0x98] sm:$0xff]
        %v250 = vld [vmem:[%s1 + $0xa0] sm:$0xff]
        %v251 = vld [vmem:[%s1 + $0xa8] sm:$0xff]
        %v252 = vld [vmem:[%s1 + $0xb0] sm:$0xff]
        %v253 = vld [vmem:[%s1 + $0xb8] sm:$0xff]
        %v254 = vld [vmem:[%s1 + $0xc0] sm:$0xff]
        %v255 = vld [vmem:[%s1 + $0xc8] sm:$0xff]
        %v256 = vld [vmem:[%s1 + $0xd0] sm:$0xff]
        %v257 = vld [vmem:[%s1 + $0xd8] sm:$0xff]
        %v258 = vld [vmem:[%s1 + $0xe0] sm:$0xff]
        %v259 = vld [vmem:[%s1 + $0xe8] sm:$0xff]
        %v260 = vld [vmem:[%s1 + $0xf0] sm:$0xff]
        %v261 = vld [vmem:[%s1 + $0xf8] sm:$0xff]
        %v262 = vld [vmem:[%s1 + $0x100] sm:$0xff]
        %v263 = vld [vmem:[%s1 + $0x108] sm:$0xff]
        %v264 = vld [vmem:[%s1 + $0x110] sm:$0xff]
        %v265 = vld [vmem:[%s1 + $0x118] sm:$0xff]
        %v266 = vld [vmem:[%s1 + $0x120] sm:$0xff]
        %v267 = vld [vmem:[%s1 + $0x128] sm:$0xff]
        %v268 = vld [vmem:[%s1 + $0x130] sm:$0xff]
        %v269 = vld [vmem:[%s1 + $0x138] sm:$0xff]
        %v270 = vld [vmem:[%s1 + $0x140] sm:$0xff]
        %v271 = vld [vmem:[%s1 + $0x148] sm:$0xff]
        %v272 = vld [vmem:[%s1 + $0x150] sm:$0xff]
        %v273 = vld [vmem:[%s1 + $0x158] sm:$0xff]
        %v274 = vld [vmem:[%s1 + $0x160] sm:$0xff]
        %v275 = vld [vmem:[%s1 + $0x168] sm:$0xff]
        %v276 = vld [vmem:[%s1 + $0x170] sm:$0xff]
        %v277 = vld [vmem:[%s1 + $0x178] sm:$0xff]
        %v278 = vld [vmem:[%s1 + $0x180] sm:$0xff]
        %v279 = vld [vmem:[%s1 + $0x188] sm:$0xff]
        %v280 = vld [vmem:[%s1 + $0x190] sm:$0xff]
        %v281 = vld [vmem:[%s1 + $0x198] sm:$0xff]
        %v282 = vld [vmem:[%s1 + $0x1a0] sm:$0xff]
        %v283 = vld [vmem:[%s1 + $0x1a8] sm:$0xff]
        %v284 = vld [vmem:[%s1 + $0x1b0] sm:$0xff]
        %v285 = vld [vmem:[%s1 + $0x1b8] sm:$0xff]
        %v286 = vld [vmem:[%s1 + $0x1c0] sm:$0xff]
        %v287 = vld [vmem:[%s1 + $0x1c8] sm:$0xff]
        %v288 = vld [vmem:[%s1 + $0x1d0] sm:$0xff]
        %v289 = vld [vmem:[%s1 + $0x1d8] sm:$0xff]
        %v290 = vld [vmem:[%s1 + $0x1e0] sm:$0xff]
        %v291 = vld [vmem:[%s1 + $0x1e8] sm:$0xff]
        %v292 = vld [vmem:[%s1 + $0x1f0] sm:$0xff]
        %v293 = vld [vmem:[%s1 + $0x1f8] sm:$0xff]
        %v294 = vld [vmem:[%s1 + $0x200] sm:$0xff]
        %v295 = vld [vmem:[%s1 + $0x208] sm:$0xff]
        %v296 = vld [vmem:[%s1 + $0x210] sm:$0xff]
        %v297 = vld [vmem:[%s1 + $0x218] sm:$0xff]
        %v298 = vld [vmem:[%s1 + $0x220] sm:$0xff]
        %v299 = vld [vmem:[%s1 + $0x228] sm:$0xff]
        %v300 = vld [vmem:[%s1 + $0x230] sm:$0xff]
        %v301 = vld [vmem:[%s1 + $0x238] sm:$0xff]
        %v302 = vld [vmem:[%s1 + $0x240] sm:$0xff]
        %v303 = vld [vmem:[%s1 + $0x248] sm:$0xff]
        %v304 = vld [vmem:[%s1 + $0x250] sm:$0xff]
        %v305 = vld [vmem:[%s1 + $0x258] sm:$0xff]
        %v306 = vld [vmem:[%s1 + $0x260] sm:$0xff]
        %v307 = vld [vmem:[%s1 + $0x268] sm:$0xff]
        %v308 = vld [vmem:[%s1 + $0x270] sm:$0xff]
        %v309 = vld [vmem:[%s1 + $0x278] sm:$0xff]
        %v310 = vld [vmem:[%s1 + $0x280] sm:$0xff]
        %v311 = vld [vmem:[%s1 + $0x288] sm:$0xff]
        %v312 = vld [vmem:[%s1 + $0x290] sm:$0xff]
        %v313 = vld [vmem:[%s1 + $0x298] sm:$0xff]
        %v314 = vld [vmem:[%s1 + $0x2a0] sm:$0xff]
        %v315 = vld [vmem:[%s1 + $0x2a8] sm:$0xff]
        %v316 = vld [vmem:[%s1 + $0x2b0] sm:$0xff]
        %v317 = vld [vmem:[%s1 + $0x2b8] sm:$0xff]
        %v318 = vld [vmem:[%s1 + $0x2c0] sm:$0xff]
        %v319 = vld [vmem:[%s1 + $0x2c8] sm:$0xff]
        %v320 = vld [vmem:[%s1 + $0x2d0] sm:$0xff]
        %v321 = vld [vmem:[%s1 + $0x2d8] sm:$0xff]
        %v322 = vld [vmem:[%s1 + $0x2e0] sm:$0xff]
        %v323 = vld [vmem:[%s1 + $0x2e8] sm:$0xff]
        %v324 = vld [vmem:[%s1 + $0x2f0] sm:$0xff]
        %v325 = vld [vmem:[%s1 + $0x2f8] sm:$0xff]
        %v326 = vld [vmem:[%s1 + $0x300] sm:$0xff]
        %v327 = vld [vmem:[%s1 + $0x308] sm:$0xff]
        %v328 = vld [vmem:[%s1 + $0x310] sm:$0xff]
        %v329 = vld [vmem:[%s1 + $0x318] sm:$0xff]
        %v330 = vld [vmem:[%s1 + $0x320] sm:$0xff]
        %v331 = vld [vmem:[%s1 + $0x328] sm:$0xff]
        %v332 = vld [vmem:[%s1 + $0x330] sm:$0xff]
        %v333 = vld [vmem:[%s1 + $0x338] sm:$0xff]
        %v334 = vld [vmem:[%s1 + $0x340] sm:$0xff]
        %v335 = vld [vmem:[%s1 + $0x348] sm:$0xff]
        %v336 = vld [vmem:[%s1 + $0x350] sm:$0xff]
        %v337 = vld [vmem:[%s1 + $0x358] sm:$0xff]
        %v338 = vld [vmem:[%s1 + $0x360] sm:$0xff]
        %v339 = vld [vmem:[%s1 + $0x368] sm:$0xff]
        %v340 = vld [vmem:[%s1 + $0x370] sm:$0xff]
        %v341 = vld [vmem:[%s1 + $0x378] sm:$0xff]
        %v342 = vld [vmem:[%s1 + $0x380] sm:$0xff]
        %v343 = vld [vmem:[%s1 + $0x388] sm:$0xff]
        %v344 = vld [vmem:[%s1 + $0x390] sm:$0xff]
        %v345 = vld [vmem:[%s1 + $0x398] sm:$0xff]
        %v346 = vld [vmem:[%s1 + $0x3a0] sm:$0xff]
        %v347 = vld [vmem:[%s1 + $0x3a8] sm:$0xff]
        %v348 = vld [vmem:[%s1 + $0x3b0] sm:$0xff]
        %v349 = vld [vmem:[%s1 + $0x3b8] sm:$0xff]
        %v350 = vld [vmem:[%s1 + $0x3c0] sm:$0xff]
        %v351 = vld [vmem:[%s1 + $0x3c8] sm:$0xff]
        %v352 = vld [vmem:[%s1 + $0x3d0] sm:$0xff]
        %v353 = vld [vmem:[%s1 + $0x3d8] sm:$0xff]
        %v354 = vld [vmem:[%s1 + $0x3e0] sm:$0xff]
        %v355 = vld [vmem:[%s1 + $0x3e8] sm:$0xff]
        %v356 = vld [vmem:[%s1 + $0x3f0] sm:$0xff]
        %v357 = vld [vmem:[%s1 + $0x3f8] sm:$0xff]
        %v358 = vld [vmem:[%s1 + $0x400] sm:$0xff]
        %v359 = vld [vmem:[%s1 + $0x408] sm:$0xff]
        %v360 = vld [vmem:[%s1 + $0x410] sm:$0xff]
        %v361 = vld [vmem:[%s1 + $0x418] sm:$0xff]
        %v362 = vld [vmem:[%s1 + $0x420] sm:$0xff]
        %v363 = vld [vmem:[%s1 + $0x428] sm:$0xff]
        %v364 = vld [vmem:[%s1 + $0x430] sm:$0xff]
        %v365 = vld [vmem:[%s1 + $0x438] sm:$0xff]
        %v366 = vld [vmem:[%s1 + $0x440] sm:$0xff]
        %v367 = vld [vmem:[%s1 + $0x448] sm:$0xff]
        %v368 = vld [vmem:[%s1 + $0x450] sm:$0xff]
        %v369 = vld [vmem:[%s1 + $0x458] sm:$0xff]
        %v370 = vld [vmem:[%s1 + $0x460] sm:$0xff]
        %v371 = vld [vmem:[%s1 + $0x468] sm:$0xff]
        %v372 = vld [vmem:[%s1 + $0x470] sm:$0xff]
        %v373 = vld [vmem:[%s1 + $0x478] sm:$0xff]
        %v374 = vld [vmem:[%s1 + $0x480] sm:$0xff]
        %v375 = vld [vmem:[%s1 + $0x488] sm:$0xff]
        %v376 = vld [vmem:[%s1 + $0x490] sm:$0xff]
        %v377 = vld [vmem:[%s1 + $0x498] sm:$0xff]
        %v378 = vld [vmem:[%s1 + $0x4a0] sm:$0xff]
        %v379 = vld [vmem:[%s1 + $0x4a8] sm:$0xff]
        %v380 = vld [vmem:[%s1 + $0x4b0] sm:$0xff]
        %v381 = vld [vmem:[%s1 + $0x4b8] sm:$0xff]
        %v382 = vld [vmem:[%s1 + $0x4c0] sm:$0xff]
        %v383 = vld [vmem:[%s1 + $0x4c8] sm:$0xff]
        %v384 = vld [vmem:[%s1 + $0x4d0] sm:$0xff]
        %v385 = vld [vmem:[%s1 + $0x4d8] sm:$0xff]
        %v386 = vld [vmem:[%s1 + $0x4e0] sm:$0xff]
        %v387 = vld [vmem:[%s1 + $0x4e8] sm:$0xff]
        %v388 = vld [vmem:[%s1 + $0x4f0] sm:$0xff]
        %v389 = vld [vmem:[%s1 + $0x4f8] sm:$0xff]
        %v390 = vld [vmem:[%s1 + $0x500] sm:$0xff]
        %v391 = vld [vmem:[%s1 + $0x508] sm:$0xff]
        %v392 = vld [vmem:[%s1 + $0x510] sm:$0xff]
        %v393 = vld [vmem:[%s1 + $0x518] sm:$0xff]
        %v394 = vld [vmem:[%s1 + $0x520] sm:$0xff]
        %v395 = vld [vmem:[%s1 + $0x528] sm:$0xff]
        %v396 = vld [vmem:[%s1 + $0x530] sm:$0xff]
        %v397 = vld [vmem:[%s1 + $0x538] sm:$0xff]
        %v398 = vld [vmem:[%s1 + $0x540] sm:$0xff]
        %v399 = vld [vmem:[%s1 + $0x548] sm:$0xff]
        %v400 = vld [vmem:[%s1 + $0x550] sm:$0xff]
        %v401 = vld [vmem:[%s1 + $0x558] sm:$0xff]
        %v402 = vld [vmem:[%s1 + $0x560] sm:$0xff]
        %v403 = vld [vmem:[%s1 + $0x568] sm:$0xff]
        %v404 = vld [vmem:[%s1 + $0x570] sm:$0xff]
        %v405 = vld [vmem:[%s1 + $0x578] sm:$0xff]
        %v406 = vld [vmem:[%s1 + $0x580] sm:$0xff]
        %v407 = vld [vmem:[%s1 + $0x588] sm:$0xff]
        %v408 = vld [vmem:[%s1 + $0x590] sm:$0xff]
        %v409 = vld [vmem:[%s1 + $0x598] sm:$0xff]
        %v410 = vld [vmem:[%s1 + $0x5a0] sm:$0xff]
        %v411 = vld [vmem:[%s1 + $0x5a8] sm:$0xff]
        %v412 = vld [vmem:[%s1 + $0x5b0] sm:$0xff]
        %v413 = vld [vmem:[%s1 + $0x5b8] sm:$0xff]
        %v414 = vld [vmem:[%s1 + $0x5c0] sm:$0xff]
        %v415 = vld [vmem:[%s1 + $0x5c8] sm:$0xff]
        %v416 = vld [vmem:[%s1 + $0x5d0] sm:$0xff]
        %v417 = vld [vmem:[%s1 + $0x5d8] sm:$0xff]
        %v418 = vld [vmem:[%s1 + $0x5e0] sm:$0xff]
        %v419 = vld [vmem:[%s1 + $0x5e8] sm:$0xff]
        %v420 = vld [vmem:[%s1 + $0x5f0] sm:$0xff]
        %v421 = vld [vmem:[%s1 + $0x5f8] sm:$0xff]
        %v422 = vld [vmem:[%s1 + $0x600] sm:$0xff]
        %v423 = vld [vmem:[%s1 + $0x608] sm:$0xff]
        %v424 = vld [vmem:[%s1 + $0x610] sm:$0xff]
        %v425 = vld [vmem:[%s1 + $0x618] sm:$0xff]
        %v426 = vld [vmem:[%s1 + $0x620] sm:$0xff]
        %v427 = vld [vmem:[%s1 + $0x628] sm:$0xff]
        %v428 = vld [vmem:[%s1 + $0x630] sm:$0xff]
        %v429 = vld [vmem:[%s1 + $0x638] sm:$0xff]
        %v430 = vld [vmem:[%s2] sm:$0xff]
        %v431 = vld [vmem:[%s2 + $0x8] sm:$0x3]
        %v434 = vlaneseq
        %v435 = vshrl.u32 %v434, 7
        %v436 = vsub.s32 0, %v435
        %v437 = vrot.slane %v430, %v436
        %v438 = vlaneseq
        %v439 = vshrl.u32 %v438, 7
        %v440 = vsub.s32 1, %v439
        %v441 = vrot.slane %v430, %v440
        %v442 = vlaneseq
        %v443 = vshrl.u32 %v442, 7
        %v444 = vsub.s32 2, %v443
        %v445 = vrot.slane %v430, %v444
        %v446 = vlaneseq
        %v447 = vshrl.u32 %v446, 7
        %v448 = vsub.s32 3, %v447
        %v449 = vrot.slane %v430, %v448
        %v450 = vlaneseq
        %v451 = vshrl.u32 %v450, 7
        %v452 = vsub.s32 4, %v451
        %v453 = vrot.slane %v430, %v452
        %v454 = vlaneseq
        %v455 = vshrl.u32 %v454, 7
        %v456 = vsub.s32 5, %v455
        %v457 = vrot.slane %v430, %v456
        %v458 = vlaneseq
        %v459 = vshrl.u32 %v458, 7
        %v460 = vsub.s32 6, %v459
        %v461 = vrot.slane %v430, %v460
        %v462 = vlaneseq
        %v463 = vshrl.u32 %v462, 7
        %v464 = vsub.s32 7, %v463
        %v465 = vrot.slane %v430, %v464
        %v466 = vlaneseq
        %v467 = vshrl.u32 %v466, 7
        %v468 = vsub.s32 0, %v467
        %v469 = vrot.slane %v431, %v468
        %v470 = vlaneseq
        %v471 = vshrl.u32 %v470, 7
        %v472 = vsub.s32 1, %v471
        %v473 = vrot.slane %v431, %v472
        %484 = vxpose.xlu0.c.b16.start [1/8] %v210, 128
        %485 = vxpose.xlu0.c.b16.cont [2/8] %v211, 128
        %486 = vxpose.xlu0.c.b16.cont [3/8] %v212, 128
        %487 = vxpose.xlu0.c.b16.cont [4/8] %v213, 128
        %488 = vxpose.xlu0.c.b16.cont [5/8] %v214, 128
        %489 = vxpose.xlu0.c.b16.cont [6/8] %v215, 128
        %490 = vxpose.xlu0.c.b16.cont [7/8] %v216, 128
        %491 = vxpose.xlu0.c.b16.end [8/8] %v217, 128
        %v492 = vpop.trf.xlu0
        %v493 = vpop.trf.xlu0
        %v494 = vpop.trf.xlu0
        %v495 = vpop.trf.xlu0
        %v496 = vpop.trf.xlu0
        %v497 = vpop.trf.xlu0
        %v498 = vpop.trf.xlu0
        %v499 = vpop.trf.xlu0
        %500 = vxpose.xlu0.c.b16.start [1/8] %v218, 128
        %501 = vxpose.xlu0.c.b16.cont [2/8] %v219, 128
        %502 = vxpose.xlu0.c.b16.cont [3/8] %v220, 128
        %503 = vxpose.xlu0.c.b16.cont [4/8] %v221, 128
        %504 = vxpose.xlu0.c.b16.cont [5/8] %v222, 128
        %505 = vxpose.xlu0.c.b16.cont [6/8] %v223, 128
        %506 = vxpose.xlu0.c.b16.cont [7/8] %v224, 128
        %507 = vxpose.xlu0.c.b16.end [8/8] %v225, 128
        %v508 = vpop.trf.xlu0
        %v509 = vpop.trf.xlu0
        %v510 = vpop.trf.xlu0
        %v511 = vpop.trf.xlu0
        %v512 = vpop.trf.xlu0
        %v513 = vpop.trf.xlu0
        %v514 = vpop.trf.xlu0
        %v515 = vpop.trf.xlu0
        %516 = vxpose.xlu0.c.b16.start [1/8] %v226, 128
        %517 = vxpose.xlu0.c.b16.cont [2/8] %v227, 128
        %518 = vxpose.xlu0.c.b16.cont [3/8] %v228, 128
        %519 = vxpose.xlu0.c.b16.cont [4/8] %v229, 128
        %520 = vxpose.xlu0.c.b16.cont [5/8] 0, 128
        %521 = vxpose.xlu0.c.b16.cont [6/8] 0, 128
        %522 = vxpose.xlu0.c.b16.cont [7/8] 0, 128
        %523 = vxpose.xlu0.c.b16.end [8/8] 0, 128
        %v524 = vpop.trf.xlu0
        %v525 = vpop.trf.xlu0
        %v526 = vpop.trf.xlu0
        %v527 = vpop.trf.xlu0
        %v528 = vpop.trf.xlu0
        %v529 = vpop.trf.xlu0
        %v530 = vpop.trf.xlu0
        %v531 = vpop.trf.xlu0
        %v732 = vunpack.c.l.b16 %v230
        %v733 = vunpack.c.h.b16 %v230
        %v734 = vunpack.c.l.b16 %v231
        %v735 = vunpack.c.h.b16 %v231
        %v736 = vunpack.c.l.b16 %v232
        %v737 = vunpack.c.h.b16 %v232
        %v738 = vunpack.c.l.b16 %v233
        %v739 = vunpack.c.h.b16 %v233
        %v740 = vunpack.c.l.b16 %v234
        %v741 = vunpack.c.h.b16 %v234
        %v742 = vunpack.c.l.b16 %v235
        %v743 = vunpack.c.h.b16 %v235
        %v744 = vunpack.c.l.b16 %v236
        %v745 = vunpack.c.h.b16 %v236
        %v746 = vunpack.c.l.b16 %v237
        %v747 = vunpack.c.h.b16 %v237
        %v748 = vunpack.c.l.b16 %v238
        %v749 = vunpack.c.h.b16 %v238
        %v750 = vunpack.c.l.b16 %v239
        %v751 = vunpack.c.h.b16 %v239
        %v752 = vunpack.c.l.b16 %v240
        %v753 = vunpack.c.h.b16 %v240
        %v754 = vunpack.c.l.b16 %v241
        %v755 = vunpack.c.h.b16 %v241
        %v756 = vunpack.c.l.b16 %v242
        %v757 = vunpack.c.h.b16 %v242
        %v758 = vunpack.c.l.b16 %v243
        %v759 = vunpack.c.h.b16 %v243
        %v760 = vunpack.c.l.b16 %v244
        %v761 = vunpack.c.h.b16 %v244
        %v762 = vunpack.c.l.b16 %v245
        %v763 = vunpack.c.h.b16 %v245
        %v764 = vunpack.c.l.b16 %v246
        %v765 = vunpack.c.h.b16 %v246
        %v766 = vunpack.c.l.b16 %v247
        %v767 = vunpack.c.h.b16 %v247
        %v768 = vunpack.c.l.b16 %v248
        %v769 = vunpack.c.h.b16 %v248
        %v770 = vunpack.c.l.b16 %v249
        %v771 = vunpack.c.h.b16 %v249
        %v772 = vunpack.c.l.b16 %v250
        %v773 = vunpack.c.h.b16 %v250
        %v774 = vunpack.c.l.b16 %v251
        %v775 = vunpack.c.h.b16 %v251
        %v776 = vunpack.c.l.b16 %v252
        %v777 = vunpack.c.h.b16 %v252
        %v778 = vunpack.c.l.b16 %v253
        %v779 = vunpack.c.h.b16 %v253
        %v780 = vunpack.c.l.b16 %v254
        %v781 = vunpack.c.h.b16 %v254
        %v782 = vunpack.c.l.b16 %v255
        %v783 = vunpack.c.h.b16 %v255
        %v784 = vunpack.c.l.b16 %v256
        %v785 = vunpack.c.h.b16 %v256
        %v786 = vunpack.c.l.b16 %v257
        %v787 = vunpack.c.h.b16 %v257
        %v788 = vunpack.c.l.b16 %v258
        %v789 = vunpack.c.h.b16 %v258
        %v790 = vunpack.c.l.b16 %v259
        %v791 = vunpack.c.h.b16 %v259
        %v792 = vunpack.c.l.b16 %v260
        %v793 = vunpack.c.h.b16 %v260
        %v794 = vunpack.c.l.b16 %v261
        %v795 = vunpack.c.h.b16 %v261
        %v796 = vunpack.c.l.b16 %v262
        %v797 = vunpack.c.h.b16 %v262
        %v798 = vunpack.c.l.b16 %v263
        %v799 = vunpack.c.h.b16 %v263
        %v800 = vunpack.c.l.b16 %v264
        %v801 = vunpack.c.h.b16 %v264
        %v802 = vunpack.c.l.b16 %v265
        %v803 = vunpack.c.h.b16 %v265
        %v804 = vunpack.c.l.b16 %v266
        %v805 = vunpack.c.h.b16 %v266
        %v806 = vunpack.c.l.b16 %v267
        %v807 = vunpack.c.h.b16 %v267
        %v808 = vunpack.c.l.b16 %v268
        %v809 = vunpack.c.h.b16 %v268
        %v810 = vunpack.c.l.b16 %v269
        %v811 = vunpack.c.h.b16 %v269
        %v812 = vunpack.c.l.b16 %v270
        %v813 = vunpack.c.h.b16 %v270
        %v814 = vunpack.c.l.b16 %v271
        %v815 = vunpack.c.h.b16 %v271
        %v816 = vunpack.c.l.b16 %v272
        %v817 = vunpack.c.h.b16 %v272
        %v818 = vunpack.c.l.b16 %v273
        %v819 = vunpack.c.h.b16 %v273
        %v820 = vunpack.c.l.b16 %v274
        %v821 = vunpack.c.h.b16 %v274
        %v822 = vunpack.c.l.b16 %v275
        %v823 = vunpack.c.h.b16 %v275
        %v824 = vunpack.c.l.b16 %v276
        %v825 = vunpack.c.h.b16 %v276
        %v826 = vunpack.c.l.b16 %v277
        %v827 = vunpack.c.h.b16 %v277
        %v828 = vunpack.c.l.b16 %v278
        %v829 = vunpack.c.h.b16 %v278
        %v830 = vunpack.c.l.b16 %v279
        %v831 = vunpack.c.h.b16 %v279
        %v832 = vunpack.c.l.b16 %v280
        %v833 = vunpack.c.h.b16 %v280
        %v834 = vunpack.c.l.b16 %v281
        %v835 = vunpack.c.h.b16 %v281
        %v836 = vunpack.c.l.b16 %v282
        %v837 = vunpack.c.h.b16 %v282
        %v838 = vunpack.c.l.b16 %v283
        %v839 = vunpack.c.h.b16 %v283
        %v840 = vunpack.c.l.b16 %v284
        %v841 = vunpack.c.h.b16 %v284
        %v842 = vunpack.c.l.b16 %v285
        %v843 = vunpack.c.h.b16 %v285
        %v844 = vunpack.c.l.b16 %v286
        %v845 = vunpack.c.h.b16 %v286
        %v846 = vunpack.c.l.b16 %v287
        %v847 = vunpack.c.h.b16 %v287
        %v848 = vunpack.c.l.b16 %v288
        %v849 = vunpack.c.h.b16 %v288
        %v850 = vunpack.c.l.b16 %v289
        %v851 = vunpack.c.h.b16 %v289
        %v852 = vunpack.c.l.b16 %v290
        %v853 = vunpack.c.h.b16 %v290
        %v854 = vunpack.c.l.b16 %v291
        %v855 = vunpack.c.h.b16 %v291
        %v856 = vunpack.c.l.b16 %v292
        %v857 = vunpack.c.h.b16 %v292
        %v858 = vunpack.c.l.b16 %v293
        %v859 = vunpack.c.h.b16 %v293
        %v860 = vunpack.c.l.b16 %v294
        %v861 = vunpack.c.h.b16 %v294
        %v862 = vunpack.c.l.b16 %v295
        %v863 = vunpack.c.h.b16 %v295
        %v864 = vunpack.c.l.b16 %v296
        %v865 = vunpack.c.h.b16 %v296
        %v866 = vunpack.c.l.b16 %v297
        %v867 = vunpack.c.h.b16 %v297
        %v868 = vunpack.c.l.b16 %v298
        %v869 = vunpack.c.h.b16 %v298
        %v870 = vunpack.c.l.b16 %v299
        %v871 = vunpack.c.h.b16 %v299
        %v872 = vunpack.c.l.b16 %v300
        %v873 = vunpack.c.h.b16 %v300
        %v874 = vunpack.c.l.b16 %v301
        %v875 = vunpack.c.h.b16 %v301
        %v876 = vunpack.c.l.b16 %v302
        %v877 = vunpack.c.h.b16 %v302
        %v878 = vunpack.c.l.b16 %v303
        %v879 = vunpack.c.h.b16 %v303
        %v880 = vunpack.c.l.b16 %v304
        %v881 = vunpack.c.h.b16 %v304
        %v882 = vunpack.c.l.b16 %v305
        %v883 = vunpack.c.h.b16 %v305
        %v884 = vunpack.c.l.b16 %v306
        %v885 = vunpack.c.h.b16 %v306
        %v886 = vunpack.c.l.b16 %v307
        %v887 = vunpack.c.h.b16 %v307
        %v888 = vunpack.c.l.b16 %v308
        %v889 = vunpack.c.h.b16 %v308
        %v890 = vunpack.c.l.b16 %v309
        %v891 = vunpack.c.h.b16 %v309
        %v892 = vunpack.c.l.b16 %v310
        %v893 = vunpack.c.h.b16 %v310
        %v894 = vunpack.c.l.b16 %v311
        %v895 = vunpack.c.h.b16 %v311
        %v896 = vunpack.c.l.b16 %v312
        %v897 = vunpack.c.h.b16 %v312
        %v898 = vunpack.c.l.b16 %v313
        %v899 = vunpack.c.h.b16 %v313
        %v900 = vunpack.c.l.b16 %v314
        %v901 = vunpack.c.h.b16 %v314
        %v902 = vunpack.c.l.b16 %v315
        %v903 = vunpack.c.h.b16 %v315
        %v904 = vunpack.c.l.b16 %v316
        %v905 = vunpack.c.h.b16 %v316
        %v906 = vunpack.c.l.b16 %v317
        %v907 = vunpack.c.h.b16 %v317
        %v908 = vunpack.c.l.b16 %v318
        %v909 = vunpack.c.h.b16 %v318
        %v910 = vunpack.c.l.b16 %v319
        %v911 = vunpack.c.h.b16 %v319
        %v912 = vunpack.c.l.b16 %v320
        %v913 = vunpack.c.h.b16 %v320
        %v914 = vunpack.c.l.b16 %v321
        %v915 = vunpack.c.h.b16 %v321
        %v916 = vunpack.c.l.b16 %v322
        %v917 = vunpack.c.h.b16 %v322
        %v918 = vunpack.c.l.b16 %v323
        %v919 = vunpack.c.h.b16 %v323
        %v920 = vunpack.c.l.b16 %v324
        %v921 = vunpack.c.h.b16 %v324
        %v922 = vunpack.c.l.b16 %v325
        %v923 = vunpack.c.h.b16 %v325
        %v924 = vunpack.c.l.b16 %v326
        %v925 = vunpack.c.h.b16 %v326
        %v926 = vunpack.c.l.b16 %v327
        %v927 = vunpack.c.h.b16 %v327
        %v928 = vunpack.c.l.b16 %v328
        %v929 = vunpack.c.h.b16 %v328
        %v930 = vunpack.c.l.b16 %v329
        %v931 = vunpack.c.h.b16 %v329
        %v932 = vunpack.c.l.b16 %v330
        %v933 = vunpack.c.h.b16 %v330
        %v934 = vunpack.c.l.b16 %v331
        %v935 = vunpack.c.h.b16 %v331
        %v936 = vunpack.c.l.b16 %v332
        %v937 = vunpack.c.h.b16 %v332
        %v938 = vunpack.c.l.b16 %v333
        %v939 = vunpack.c.h.b16 %v333
        %v940 = vunpack.c.l.b16 %v334
        %v941 = vunpack.c.h.b16 %v334
        %v942 = vunpack.c.l.b16 %v335
        %v943 = vunpack.c.h.b16 %v335
        %v944 = vunpack.c.l.b16 %v336
        %v945 = vunpack.c.h.b16 %v336
        %v946 = vunpack.c.l.b16 %v337
        %v947 = vunpack.c.h.b16 %v337
        %v948 = vunpack.c.l.b16 %v338
        %v949 = vunpack.c.h.b16 %v338
        %v950 = vunpack.c.l.b16 %v339
        %v951 = vunpack.c.h.b16 %v339
        %v952 = vunpack.c.l.b16 %v340
        %v953 = vunpack.c.h.b16 %v340
        %v954 = vunpack.c.l.b16 %v341
        %v955 = vunpack.c.h.b16 %v341
        %v956 = vunpack.c.l.b16 %v342
        %v957 = vunpack.c.h.b16 %v342
        %v958 = vunpack.c.l.b16 %v343
        %v959 = vunpack.c.h.b16 %v343
        %v960 = vunpack.c.l.b16 %v344
        %v961 = vunpack.c.h.b16 %v344
        %v962 = vunpack.c.l.b16 %v345
        %v963 = vunpack.c.h.b16 %v345
        %v964 = vunpack.c.l.b16 %v346
        %v965 = vunpack.c.h.b16 %v346
        %v966 = vunpack.c.l.b16 %v347
        %v967 = vunpack.c.h.b16 %v347
        %v968 = vunpack.c.l.b16 %v348
        %v969 = vunpack.c.h.b16 %v348
        %v970 = vunpack.c.l.b16 %v349
        %v971 = vunpack.c.h.b16 %v349
        %v972 = vunpack.c.l.b16 %v350
        %v973 = vunpack.c.h.b16 %v350
        %v974 = vunpack.c.l.b16 %v351
        %v975 = vunpack.c.h.b16 %v351
        %v976 = vunpack.c.l.b16 %v352
        %v977 = vunpack.c.h.b16 %v352
        %v978 = vunpack.c.l.b16 %v353
        %v979 = vunpack.c.h.b16 %v353
        %v980 = vunpack.c.l.b16 %v354
        %v981 = vunpack.c.h.b16 %v354
        %v982 = vunpack.c.l.b16 %v355
        %v983 = vunpack.c.h.b16 %v355
        %v984 = vunpack.c.l.b16 %v356
        %v985 = vunpack.c.h.b16 %v356
        %v986 = vunpack.c.l.b16 %v357
        %v987 = vunpack.c.h.b16 %v357
        %v988 = vunpack.c.l.b16 %v358
        %v989 = vunpack.c.h.b16 %v358
        %v990 = vunpack.c.l.b16 %v359
        %v991 = vunpack.c.h.b16 %v359
        %v992 = vunpack.c.l.b16 %v360
        %v993 = vunpack.c.h.b16 %v360
        %v994 = vunpack.c.l.b16 %v361
        %v995 = vunpack.c.h.b16 %v361
        %v996 = vunpack.c.l.b16 %v362
        %v997 = vunpack.c.h.b16 %v362
        %v998 = vunpack.c.l.b16 %v363
        %v999 = vunpack.c.h.b16 %v363
        %v1000 = vunpack.c.l.b16 %v364
        %v1001 = vunpack.c.h.b16 %v364
        %v1002 = vunpack.c.l.b16 %v365
        %v1003 = vunpack.c.h.b16 %v365
        %v1004 = vunpack.c.l.b16 %v366
        %v1005 = vunpack.c.h.b16 %v366
        %v1006 = vunpack.c.l.b16 %v367
        %v1007 = vunpack.c.h.b16 %v367
        %v1008 = vunpack.c.l.b16 %v368
        %v1009 = vunpack.c.h.b16 %v368
        %v1010 = vunpack.c.l.b16 %v369
        %v1011 = vunpack.c.h.b16 %v369
        %v1012 = vunpack.c.l.b16 %v370
        %v1013 = vunpack.c.h.b16 %v370
        %v1014 = vunpack.c.l.b16 %v371
        %v1015 = vunpack.c.h.b16 %v371
        %v1016 = vunpack.c.l.b16 %v372
        %v1017 = vunpack.c.h.b16 %v372
        %v1018 = vunpack.c.l.b16 %v373
        %v1019 = vunpack.c.h.b16 %v373
        %v1020 = vunpack.c.l.b16 %v374
        %v1021 = vunpack.c.h.b16 %v374
        %v1022 = vunpack.c.l.b16 %v375
        %v1023 = vunpack.c.h.b16 %v375
        %v1024 = vunpack.c.l.b16 %v376
        %v1025 = vunpack.c.h.b16 %v376
        %v1026 = vunpack.c.l.b16 %v377
        %v1027 = vunpack.c.h.b16 %v377
        %v1028 = vunpack.c.l.b16 %v378
        %v1029 = vunpack.c.h.b16 %v378
        %v1030 = vunpack.c.l.b16 %v379
        %v1031 = vunpack.c.h.b16 %v379
        %v1032 = vunpack.c.l.b16 %v380
        %v1033 = vunpack.c.h.b16 %v380
        %v1034 = vunpack.c.l.b16 %v381
        %v1035 = vunpack.c.h.b16 %v381
        %v1036 = vunpack.c.l.b16 %v382
        %v1037 = vunpack.c.h.b16 %v382
        %v1038 = vunpack.c.l.b16 %v383
        %v1039 = vunpack.c.h.b16 %v383
        %v1040 = vunpack.c.l.b16 %v384
        %v1041 = vunpack.c.h.b16 %v384
        %v1042 = vunpack.c.l.b16 %v385
        %v1043 = vunpack.c.h.b16 %v385
        %v1044 = vunpack.c.l.b16 %v386
        %v1045 = vunpack.c.h.b16 %v386
        %v1046 = vunpack.c.l.b16 %v387
        %v1047 = vunpack.c.h.b16 %v387
        %v1048 = vunpack.c.l.b16 %v388
        %v1049 = vunpack.c.h.b16 %v388
        %v1050 = vunpack.c.l.b16 %v389
        %v1051 = vunpack.c.h.b16 %v389
        %v1052 = vunpack.c.l.b16 %v390
        %v1053 = vunpack.c.h.b16 %v390
        %v1054 = vunpack.c.l.b16 %v391
        %v1055 = vunpack.c.h.b16 %v391
        %v1056 = vunpack.c.l.b16 %v392
        %v1057 = vunpack.c.h.b16 %v392
        %v1058 = vunpack.c.l.b16 %v393
        %v1059 = vunpack.c.h.b16 %v393
        %v1060 = vunpack.c.l.b16 %v394
        %v1061 = vunpack.c.h.b16 %v394
        %v1062 = vunpack.c.l.b16 %v395
        %v1063 = vunpack.c.h.b16 %v395
        %v1064 = vunpack.c.l.b16 %v396
        %v1065 = vunpack.c.h.b16 %v396
        %v1066 = vunpack.c.l.b16 %v397
        %v1067 = vunpack.c.h.b16 %v397
        %v1068 = vunpack.c.l.b16 %v398
        %v1069 = vunpack.c.h.b16 %v398
        %v1070 = vunpack.c.l.b16 %v399
        %v1071 = vunpack.c.h.b16 %v399
        %v1072 = vunpack.c.l.b16 %v400
        %v1073 = vunpack.c.h.b16 %v400
        %v1074 = vunpack.c.l.b16 %v401
        %v1075 = vunpack.c.h.b16 %v401
        %v1076 = vunpack.c.l.b16 %v402
        %v1077 = vunpack.c.h.b16 %v402
        %v1078 = vunpack.c.l.b16 %v403
        %v1079 = vunpack.c.h.b16 %v403
        %v1080 = vunpack.c.l.b16 %v404
        %v1081 = vunpack.c.h.b16 %v404
        %v1082 = vunpack.c.l.b16 %v405
        %v1083 = vunpack.c.h.b16 %v405
        %v1084 = vunpack.c.l.b16 %v406
        %v1085 = vunpack.c.h.b16 %v406
        %v1086 = vunpack.c.l.b16 %v407
        %v1087 = vunpack.c.h.b16 %v407
        %v1088 = vunpack.c.l.b16 %v408
        %v1089 = vunpack.c.h.b16 %v408
        %v1090 = vunpack.c.l.b16 %v409
        %v1091 = vunpack.c.h.b16 %v409
        %v1092 = vunpack.c.l.b16 %v410
        %v1093 = vunpack.c.h.b16 %v410
        %v1094 = vunpack.c.l.b16 %v411
        %v1095 = vunpack.c.h.b16 %v411
        %v1096 = vunpack.c.l.b16 %v412
        %v1097 = vunpack.c.h.b16 %v412
        %v1098 = vunpack.c.l.b16 %v413
        %v1099 = vunpack.c.h.b16 %v413
        %v1100 = vunpack.c.l.b16 %v414
        %v1101 = vunpack.c.h.b16 %v414
        %v1102 = vunpack.c.l.b16 %v415
        %v1103 = vunpack.c.h.b16 %v415
        %v1104 = vunpack.c.l.b16 %v416
        %v1105 = vunpack.c.h.b16 %v416
        %v1106 = vunpack.c.l.b16 %v417
        %v1107 = vunpack.c.h.b16 %v417
        %v1108 = vunpack.c.l.b16 %v418
        %v1109 = vunpack.c.h.b16 %v418
        %v1110 = vunpack.c.l.b16 %v419
        %v1111 = vunpack.c.h.b16 %v419
        %v1112 = vunpack.c.l.b16 %v420
        %v1113 = vunpack.c.h.b16 %v420
        %v1114 = vunpack.c.l.b16 %v421
        %v1115 = vunpack.c.h.b16 %v421
        %v1116 = vunpack.c.l.b16 %v422
        %v1117 = vunpack.c.h.b16 %v422
        %v1118 = vunpack.c.l.b16 %v423
        %v1119 = vunpack.c.h.b16 %v423
        %v1120 = vunpack.c.l.b16 %v424
        %v1121 = vunpack.c.h.b16 %v424
        %v1122 = vunpack.c.l.b16 %v425
        %v1123 = vunpack.c.h.b16 %v425
        %v1124 = vunpack.c.l.b16 %v426
        %v1125 = vunpack.c.h.b16 %v426
        %v1126 = vunpack.c.l.b16 %v427
        %v1127 = vunpack.c.h.b16 %v427
        %v1128 = vunpack.c.l.b16 %v428
        %v1129 = vunpack.c.h.b16 %v428
        %v1130 = vunpack.c.l.b16 %v429
        %v1131 = vunpack.c.h.b16 %v429
        %v1132 = vpack.c.b16 %v742, %v732
        %v1133 = vpack.c.b16 %v743, %v733
        %v1134 = vpack.c.b16 %v744, %v734
        %v1135 = vpack.c.b16 %v745, %v735
        %v1136 = vpack.c.b16 %v746, %v736
        %v1137 = vpack.c.b16 %v747, %v737
        %v1138 = vpack.c.b16 %v748, %v738
        %v1139 = vpack.c.b16 %v749, %v739
        %v1140 = vpack.c.b16 %v750, %v740
        %v1141 = vpack.c.b16 %v751, %v741
        %v1142 = vpack.c.b16 %v762, %v752
        %v1143 = vpack.c.b16 %v763, %v753
        %v1144 = vpack.c.b16 %v764, %v754
        %v1145 = vpack.c.b16 %v765, %v755
        %v1146 = vpack.c.b16 %v766, %v756
        %v1147 = vpack.c.b16 %v767, %v757
        %v1148 = vpack.c.b16 %v768, %v758
        %v1149 = vpack.c.b16 %v769, %v759
        %v1150 = vpack.c.b16 %v770, %v760
        %v1151 = vpack.c.b16 %v771, %v761
        %v1152 = vpack.c.b16 %v782, %v772
        %v1153 = vpack.c.b16 %v783, %v773
        %v1154 = vpack.c.b16 %v784, %v774
        %v1155 = vpack.c.b16 %v785, %v775
        %v1156 = vpack.c.b16 %v786, %v776
        %v1157 = vpack.c.b16 %v787, %v777
        %v1158 = vpack.c.b16 %v788, %v778
        %v1159 = vpack.c.b16 %v789, %v779
        %v1160 = vpack.c.b16 %v790, %v780
        %v1161 = vpack.c.b16 %v791, %v781
        %v1162 = vpack.c.b16 %v802, %v792
        %v1163 = vpack.c.b16 %v803, %v793
        %v1164 = vpack.c.b16 %v804, %v794
        %v1165 = vpack.c.b16 %v805, %v795
        %v1166 = vpack.c.b16 %v806, %v796
        %v1167 = vpack.c.b16 %v807, %v797
        %v1168 = vpack.c.b16 %v808, %v798
        %v1169 = vpack.c.b16 %v809, %v799
        %v1170 = vpack.c.b16 %v810, %v800
        %v1171 = vpack.c.b16 %v811, %v801
        %v1172 = vpack.c.b16 %v822, %v812
        %v1173 = vpack.c.b16 %v823, %v813
        %v1174 = vpack.c.b16 %v824, %v814
        %v1175 = vpack.c.b16 %v825, %v815
        %v1176 = vpack.c.b16 %v826, %v816
        %v1177 = vpack.c.b16 %v827, %v817
        %v1178 = vpack.c.b16 %v828, %v818
        %v1179 = vpack.c.b16 %v829, %v819
        %v1180 = vpack.c.b16 %v830, %v820
        %v1181 = vpack.c.b16 %v831, %v821
        %v1182 = vpack.c.b16 %v842, %v832
        %v1183 = vpack.c.b16 %v843, %v833
        %v1184 = vpack.c.b16 %v844, %v834
        %v1185 = vpack.c.b16 %v845, %v835
        %v1186 = vpack.c.b16 %v846, %v836
        %v1187 = vpack.c.b16 %v847, %v837
        %v1188 = vpack.c.b16 %v848, %v838
        %v1189 = vpack.c.b16 %v849, %v839
        %v1190 = vpack.c.b16 %v850, %v840
        %v1191 = vpack.c.b16 %v851, %v841
        %v1192 = vpack.c.b16 %v862, %v852
        %v1193 = vpack.c.b16 %v863, %v853
        %v1194 = vpack.c.b16 %v864, %v854
        %v1195 = vpack.c.b16 %v865, %v855
        %v1196 = vpack.c.b16 %v866, %v856
        %v1197 = vpack.c.b16 %v867, %v857
        %v1198 = vpack.c.b16 %v868, %v858
        %v1199 = vpack.c.b16 %v869, %v859
        %v1200 = vpack.c.b16 %v870, %v860
        %v1201 = vpack.c.b16 %v871, %v861
        %v1202 = vpack.c.b16 %v882, %v872
        %v1203 = vpack.c.b16 %v883, %v873
        %v1204 = vpack.c.b16 %v884, %v874
        %v1205 = vpack.c.b16 %v885, %v875
        %v1206 = vpack.c.b16 %v886, %v876
        %v1207 = vpack.c.b16 %v887, %v877
        %v1208 = vpack.c.b16 %v888, %v878
        %v1209 = vpack.c.b16 %v889, %v879
        %v1210 = vpack.c.b16 %v890, %v880
        %v1211 = vpack.c.b16 %v891, %v881
        %v1212 = vpack.c.b16 %v902, %v892
        %v1213 = vpack.c.b16 %v903, %v893
        %v1214 = vpack.c.b16 %v904, %v894
        %v1215 = vpack.c.b16 %v905, %v895
        %v1216 = vpack.c.b16 %v906, %v896
        %v1217 = vpack.c.b16 %v907, %v897
        %v1218 = vpack.c.b16 %v908, %v898
        %v1219 = vpack.c.b16 %v909, %v899
        %v1220 = vpack.c.b16 %v910, %v900
        %v1221 = vpack.c.b16 %v911, %v901
        %v1222 = vpack.c.b16 %v922, %v912
        %v1223 = vpack.c.b16 %v923, %v913
        %v1224 = vpack.c.b16 %v924, %v914
        %v1225 = vpack.c.b16 %v925, %v915
        %v1226 = vpack.c.b16 %v926, %v916
        %v1227 = vpack.c.b16 %v927, %v917
        %v1228 = vpack.c.b16 %v928, %v918
        %v1229 = vpack.c.b16 %v929, %v919
        %v1230 = vpack.c.b16 %v930, %v920
        %v1231 = vpack.c.b16 %v931, %v921
        %v1232 = vpack.c.b16 %v942, %v932
        %v1233 = vpack.c.b16 %v943, %v933
        %v1234 = vpack.c.b16 %v944, %v934
        %v1235 = vpack.c.b16 %v945, %v935
        %v1236 = vpack.c.b16 %v946, %v936
        %v1237 = vpack.c.b16 %v947, %v937
        %v1238 = vpack.c.b16 %v948, %v938
        %v1239 = vpack.c.b16 %v949, %v939
        %v1240 = vpack.c.b16 %v950, %v940
        %v1241 = vpack.c.b16 %v951, %v941
        %v1242 = vpack.c.b16 %v962, %v952
        %v1243 = vpack.c.b16 %v963, %v953
        %v1244 = vpack.c.b16 %v964, %v954
        %v1245 = vpack.c.b16 %v965, %v955
        %v1246 = vpack.c.b16 %v966, %v956
        %v1247 = vpack.c.b16 %v967, %v957
        %v1248 = vpack.c.b16 %v968, %v958
        %v1249 = vpack.c.b16 %v969, %v959
        %v1250 = vpack.c.b16 %v970, %v960
        %v1251 = vpack.c.b16 %v971, %v961
        %v1252 = vpack.c.b16 %v982, %v972
        %v1253 = vpack.c.b16 %v983, %v973
        %v1254 = vpack.c.b16 %v984, %v974
        %v1255 = vpack.c.b16 %v985, %v975
        %v1256 = vpack.c.b16 %v986, %v976
        %v1257 = vpack.c.b16 %v987, %v977
        %v1258 = vpack.c.b16 %v988, %v978
        %v1259 = vpack.c.b16 %v989, %v979
        %v1260 = vpack.c.b16 %v990, %v980
        %v1261 = vpack.c.b16 %v991, %v981
        %v1262 = vpack.c.b16 %v1002, %v992
        %v1263 = vpack.c.b16 %v1003, %v993
        %v1264 = vpack.c.b16 %v1004, %v994
        %v1265 = vpack.c.b16 %v1005, %v995
        %v1266 = vpack.c.b16 %v1006, %v996
        %v1267 = vpack.c.b16 %v1007, %v997
        %v1268 = vpack.c.b16 %v1008, %v998
        %v1269 = vpack.c.b16 %v1009, %v999
        %v1270 = vpack.c.b16 %v1010, %v1000
        %v1271 = vpack.c.b16 %v1011, %v1001
        %v1272 = vpack.c.b16 %v1022, %v1012
        %v1273 = vpack.c.b16 %v1023, %v1013
        %v1274 = vpack.c.b16 %v1024, %v1014
        %v1275 = vpack.c.b16 %v1025, %v1015
        %v1276 = vpack.c.b16 %v1026, %v1016
        %v1277 = vpack.c.b16 %v1027, %v1017
        %v1278 = vpack.c.b16 %v1028, %v1018
        %v1279 = vpack.c.b16 %v1029, %v1019
        %v1280 = vpack.c.b16 %v1030, %v1020
        %v1281 = vpack.c.b16 %v1031, %v1021
        %v1282 = vpack.c.b16 %v1042, %v1032
        %v1283 = vpack.c.b16 %v1043, %v1033
        %v1284 = vpack.c.b16 %v1044, %v1034
        %v1285 = vpack.c.b16 %v1045, %v1035
        %v1286 = vpack.c.b16 %v1046, %v1036
        %v1287 = vpack.c.b16 %v1047, %v1037
        %v1288 = vpack.c.b16 %v1048, %v1038
        %v1289 = vpack.c.b16 %v1049, %v1039
        %v1290 = vpack.c.b16 %v1050, %v1040
        %v1291 = vpack.c.b16 %v1051, %v1041
        %v1292 = vpack.c.b16 %v1062, %v1052
        %v1293 = vpack.c.b16 %v1063, %v1053
        %v1294 = vpack.c.b16 %v1064, %v1054
        %v1295 = vpack.c.b16 %v1065, %v1055
        %v1296 = vpack.c.b16 %v1066, %v1056
        %v1297 = vpack.c.b16 %v1067, %v1057
        %v1298 = vpack.c.b16 %v1068, %v1058
        %v1299 = vpack.c.b16 %v1069, %v1059
        %v1300 = vpack.c.b16 %v1070, %v1060
        %v1301 = vpack.c.b16 %v1071, %v1061
        %v1302 = vpack.c.b16 %v1082, %v1072
        %v1303 = vpack.c.b16 %v1083, %v1073
        %v1304 = vpack.c.b16 %v1084, %v1074
        %v1305 = vpack.c.b16 %v1085, %v1075
        %v1306 = vpack.c.b16 %v1086, %v1076
        %v1307 = vpack.c.b16 %v1087, %v1077
        %v1308 = vpack.c.b16 %v1088, %v1078
        %v1309 = vpack.c.b16 %v1089, %v1079
        %v1310 = vpack.c.b16 %v1090, %v1080
        %v1311 = vpack.c.b16 %v1091, %v1081
        %v1312 = vpack.c.b16 %v1102, %v1092
        %v1313 = vpack.c.b16 %v1103, %v1093
        %v1314 = vpack.c.b16 %v1104, %v1094
        %v1315 = vpack.c.b16 %v1105, %v1095
        %v1316 = vpack.c.b16 %v1106, %v1096
        %v1317 = vpack.c.b16 %v1107, %v1097
        %v1318 = vpack.c.b16 %v1108, %v1098
        %v1319 = vpack.c.b16 %v1109, %v1099
        %v1320 = vpack.c.b16 %v1110, %v1100
        %v1321 = vpack.c.b16 %v1111, %v1101
        %v1322 = vpack.c.b16 %v1122, %v1112
        %v1323 = vpack.c.b16 %v1123, %v1113
        %v1324 = vpack.c.b16 %v1124, %v1114
        %v1325 = vpack.c.b16 %v1125, %v1115
        %v1326 = vpack.c.b16 %v1126, %v1116
        %v1327 = vpack.c.b16 %v1127, %v1117
        %v1328 = vpack.c.b16 %v1128, %v1118
        %v1329 = vpack.c.b16 %v1129, %v1119
        %v1330 = vpack.c.b16 %v1130, %v1120
        %v1331 = vpack.c.b16 %v1131, %v1121
        %vm1532 = vcmask 523264
        %v1534 = vsel %vm1532, %v524, 0
        %v1537 = vsel %vm1532, %v525, 0
        %v1540 = vsel %vm1532, %v526, 0
        %v1543 = vsel %vm1532, %v527, 0
        %1545 = vmatprep.subr.bf16.mxu0 %v1133
        %1546 = vmatpush1.bf16.msra.mxu0 %v1132
        %1547 = vmatprep.subr.bf16.mxu0 %v1143
        %1548 = vmatpush1.bf16.msra.mxu0 %v1142
        %1549 = vmatprep.subr.bf16.mxu0 %v1153
        %1550 = vmatpush1.bf16.msra.mxu0 %v1152
        %1551 = vmatprep.subr.bf16.mxu0 %v1163
        %1552 = vmatpush1.bf16.msra.mxu0 %v1162
        %1553 = vmatprep.subr.bf16.mxu0 %v1173
        %1554 = vmatpush1.bf16.msra.mxu0 %v1172
        %1555 = vmatprep.subr.bf16.mxu0 %v1183
        %1556 = vmatpush1.bf16.msra.mxu0 %v1182
        %1557 = vmatprep.subr.bf16.mxu0 %v1193
        %1558 = vmatpush1.bf16.msra.mxu0 %v1192
        %1559 = vmatprep.subr.bf16.mxu0 %v1203
        %1560 = vmatpush1.bf16.msra.mxu0 %v1202
        %1561 = vmatprep.subr.bf16.mxu0 %v1213
        %1562 = vmatpush1.bf16.msra.mxu0 %v1212
        %1563 = vmatprep.subr.bf16.mxu0 %v1223
        %1564 = vmatpush1.bf16.msra.mxu0 %v1222
        %1565 = vmatprep.subr.bf16.mxu0 %v1233
        %1566 = vmatpush1.bf16.msra.mxu0 %v1232
        %1567 = vmatprep.subr.bf16.mxu0 %v1243
        %1568 = vmatpush1.bf16.msra.mxu0 %v1242
        %1569 = vmatprep.subr.bf16.mxu0 %v1253
        %1570 = vmatpush1.bf16.msra.mxu0 %v1252
        %1571 = vmatprep.subr.bf16.mxu0 %v1263
        %1572 = vmatpush1.bf16.msra.mxu0 %v1262
        %1573 = vmatprep.subr.bf16.mxu0 %v1273
        %1574 = vmatpush1.bf16.msra.mxu0 %v1272
        %1575 = vmatprep.subr.bf16.mxu0 %v1283
        %1576 = vmatpush1.bf16.msra.mxu0 %v1282
        %1577 = vmatprep.mubr.bf16.mxu0 %v508
        %1578 = vmatmul.mubr.bf16.gmra.mrb[0].mxu0 %v492
        %v1579 = vpop.f32.mrb[0].mxu0
        %v1580 = vadd.f32 %v437, %v1579
        %v1581 = vpop.f32.mrb[0].mxu0
        %v1582 = vadd.f32 %v441, %v1581
        %v1583 = vpop.f32.mrb[0].mxu0
        %v1584 = vadd.f32 %v437, %v1583
        %v1585 = vpop.f32.mrb[0].mxu0
        %v1586 = vadd.f32 %v441, %v1585
        %1587 = vmatprep.mubr.bf16.mxu0 %v509
        %1588 = vmatmul.mubr.bf16.gmra.mrb[0].mxu0 %v493
        %v1589 = vpop.f32.mrb[0].mxu0
        %v1590 = vadd.f32 %v437, %v1589
        %v1591 = vpop.f32.mrb[0].mxu0
        %v1592 = vadd.f32 %v441, %v1591
        %v1593 = vpop.f32.mrb[0].mxu0
        %v1594 = vadd.f32 %v437, %v1593
        %v1595 = vpop.f32.mrb[0].mxu0
        %v1596 = vadd.f32 %v441, %v1595
        %1597 = vmatprep.mubr.bf16.mxu0 %v510
        %1598 = vmatmul.mubr.bf16.gmra.mrb[0].mxu0 %v494
        %v1599 = vpop.f32.mrb[0].mxu0
        %v1600 = vadd.f32 %v437, %v1599
        %v1601 = vpop.f32.mrb[0].mxu0
        %v1602 = vadd.f32 %v441, %v1601
        %v1603 = vpop.f32.mrb[0].mxu0
        %v1604 = vadd.f32 %v437, %v1603
        %v1605 = vpop.f32.mrb[0].mxu0
        %v1606 = vadd.f32 %v441, %v1605
        %1607 = vmatprep.mubr.bf16.mxu0 %v511
        %1608 = vmatmul.mubr.bf16.gmra.mrb[0].mxu0 %v495
        %v1609 = vpop.f32.mrb[0].mxu0
        %v1610 = vadd.f32 %v437, %v1609
        %v1611 = vpop.f32.mrb[0].mxu0
        %v1612 = vadd.f32 %v441, %v1611
        %v1613 = vpop.f32.mrb[0].mxu0
        %v1614 = vadd.f32 %v437, %v1613
        %v1615 = vpop.f32.mrb[0].mxu0
        %v1616 = vadd.f32 %v441, %v1615
        %1617 = vdwg.mxu0
        %1618 = vmatprep.subr.bf16.mxu0 %v1293
        %1619 = vmatpush1.bf16.msra.mxu0 %v1292
        %1620 = vmatprep.subr.bf16.mxu0 %v1303
        %1621 = vmatpush1.bf16.msra.mxu0 %v1302
        %1622 = vmatprep.subr.bf16.mxu0 %v1313
        %1623 = vmatpush1.bf16.msra.mxu0 %v1312
        %1624 = vmatprep.subr.bf16.mxu0 %v1323
        %1625 = vmatpush1.bf16.msra.mxu0 %v1322
        %1626 = vmatprep.subr.bf16.mxu0 0
        %1627 = vmatpush1.bf16.msra.mxu0 0
        %1628 = vmatprep.subr.bf16.mxu0 0
        %1629 = vmatpush1.bf16.msra.mxu0 0
        %1630 = vmatprep.subr.bf16.mxu0 0
        %1631 = vmatpush1.bf16.msra.mxu0 0
        %1632 = vmatprep.subr.bf16.mxu0 0
        %1633 = vmatpush1.bf16.msra.mxu0 0
        %1634 = vmatprep.subr.bf16.mxu0 0
        %1635 = vmatpush1.bf16.msra.mxu0 0
        %1636 = vmatprep.subr.bf16.mxu0 0
        %1637 = vmatpush1.bf16.msra.mxu0 0
        %1638 = vmatprep.subr.bf16.mxu0 0
        %1639 = vmatpush1.bf16.msra.mxu0 0
        %1640 = vmatprep.subr.bf16.mxu0 0
        %1641 = vmatpush1.bf16.msra.mxu0 0
        %1642 = vmatprep.subr.bf16.mxu0 0
        %1643 = vmatpush1.bf16.msra.mxu0 0
        %1644 = vmatprep.subr.bf16.mxu0 0
        %1645 = vmatpush1.bf16.msra.mxu0 0
        %1646 = vmatprep.subr.bf16.mxu0 0
        %1647 = vmatpush1.bf16.msra.mxu0 0
        %1648 = vmatprep.subr.bf16.mxu0 0
        %1649 = vmatpush1.bf16.msra.mxu0 0
        %1650 = vmatprep.mubr.bf16.mxu0 0
        %1651 = vmatmul.mubr.bf16.gmra.mrb[0].mxu0 %v1534
        %v1652 = vpop.f32.mrb[0].mxu0
        %v1653 = vadd.f32 %v1580, %v1652
        %v1654 = vpop.f32.mrb[0].mxu0
        %v1655 = vadd.f32 %v1582, %v1654
        %v1656 = vpop.f32.mrb[0].mxu0
        %v1657 = vadd.f32 %v1584, %v1656
        %v1658 = vpop.f32.mrb[0].mxu0
        %v1659 = vadd.f32 %v1586, %v1658
        %1660 = vmatprep.mubr.bf16.mxu0 0
        %1661 = vmatmul.mubr.bf16.gmra.mrb[0].mxu0 %v1537
        %v1662 = vpop.f32.mrb[0].mxu0
        %v1663 = vadd.f32 %v1590, %v1662
        %v1664 = vpop.f32.mrb[0].mxu0
        %v1665 = vadd.f32 %v1592, %v1664
        %v1666 = vpop.f32.mrb[0].mxu0
        %v1667 = vadd.f32 %v1594, %v1666
        %v1668 = vpop.f32.mrb[0].mxu0
        %v1669 = vadd.f32 %v1596, %v1668
        %1670 = vmatprep.mubr.bf16.mxu0 0
        %1671 = vmatmul.mubr.bf16.gmra.mrb[0].mxu0 %v1540
        %v1672 = vpop.f32.mrb[0].mxu0
        %v1673 = vadd.f32 %v1600, %v1672
        %v1674 = vpop.f32.mrb[0].mxu0
        %v1675 = vadd.f32 %v1602, %v1674
        %v1676 = vpop.f32.mrb[0].mxu0
        %v1677 = vadd.f32 %v1604, %v1676
        %v1678 = vpop.f32.mrb[0].mxu0
        %v1679 = vadd.f32 %v1606, %v1678
        %1680 = vmatprep.mubr.bf16.mxu0 0
        %1681 = vmatmul.mubr.bf16.gmra.mrb[0].mxu0 %v1543
        %v1682 = vpop.f32.mrb[0].mxu0
        %v1683 = vadd.f32 %v1610, %v1682
        %v1684 = vpop.f32.mrb[0].mxu0
        %v1685 = vadd.f32 %v1612, %v1684
        %v1686 = vpop.f32.mrb[0].mxu0
        %v1687 = vadd.f32 %v1614, %v1686
        %v1688 = vpop.f32.mrb[0].mxu0
        %v1689 = vadd.f32 %v1616, %v1688
        %1690 = vdwg.mxu0
        %1691 = vmatprep.subr.bf16.mxu0 %v1135
        %1692 = vmatpush1.bf16.msra.mxu0 %v1134
        %1693 = vmatprep.subr.bf16.mxu0 %v1145
        %1694 = vmatpush1.bf16.msra.mxu0 %v1144
        %1695 = vmatprep.subr.bf16.mxu0 %v1155
        %1696 = vmatpush1.bf16.msra.mxu0 %v1154
        %1697 = vmatprep.subr.bf16.mxu0 %v1165
        %1698 = vmatpush1.bf16.msra.mxu0 %v1164
        %1699 = vmatprep.subr.bf16.mxu0 %v1175
        %1700 = vmatpush1.bf16.msra.mxu0 %v1174
        %1701 = vmatprep.subr.bf16.mxu0 %v1185
        %1702 = vmatpush1.bf16.msra.mxu0 %v1184
        %1703 = vmatprep.subr.bf16.mxu0 %v1195
        %1704 = vmatpush1.bf16.msra.mxu0 %v1194
        %1705 = vmatprep.subr.bf16.mxu0 %v1205
        %1706 = vmatpush1.bf16.msra.mxu0 %v1204
        %1707 = vmatprep.subr.bf16.mxu0 %v1215
        %1708 = vmatpush1.bf16.msra.mxu0 %v1214
        %1709 = vmatprep.subr.bf16.mxu0 %v1225
        %1710 = vmatpush1.bf16.msra.mxu0 %v1224
        %1711 = vmatprep.subr.bf16.mxu0 %v1235
        %1712 = vmatpush1.bf16.msra.mxu0 %v1234
        %1713 = vmatprep.subr.bf16.mxu0 %v1245
        %1714 = vmatpush1.bf16.msra.mxu0 %v1244
        %1715 = vmatprep.subr.bf16.mxu0 %v1255
        %1716 = vmatpush1.bf16.msra.mxu0 %v1254
        %1717 = vmatprep.subr.bf16.mxu0 %v1265
        %1718 = vmatpush1.bf16.msra.mxu0 %v1264
        %1719 = vmatprep.subr.bf16.mxu0 %v1275
        %1720 = vmatpush1.bf16.msra.mxu0 %v1274
        %1721 = vmatprep.subr.bf16.mxu0 %v1285
        %1722 = vmatpush1.bf16.msra.mxu0 %v1284
        %1723 = vmatprep.mubr.bf16.mxu0 %v508
        %1724 = vmatmul.mubr.bf16.gmra.mrb[0].mxu0 %v492
        %v1725 = vpop.f32.mrb[0].mxu0
        %v1726 = vadd.f32 %v445, %v1725
        %v1727 = vpop.f32.mrb[0].mxu0
        %v1728 = vadd.f32 %v449, %v1727
        %v1729 = vpop.f32.mrb[0].mxu0
        %v1730 = vadd.f32 %v445, %v1729
        %v1731 = vpop.f32.mrb[0].mxu0
        %v1732 = vadd.f32 %v449, %v1731
        %1733 = vmatprep.mubr.bf16.mxu0 %v509
        %1734 = vmatmul.mubr.bf16.gmra.mrb[0].mxu0 %v493
        %v1735 = vpop.f32.mrb[0].mxu0
        %v1736 = vadd.f32 %v445, %v1735
        %v1737 = vpop.f32.mrb[0].mxu0
        %v1738 = vadd.f32 %v449, %v1737
        %v1739 = vpop.f32.mrb[0].mxu0
        %v1740 = vadd.f32 %v445, %v1739
        %v1741 = vpop.f32.mrb[0].mxu0
        %v1742 = vadd.f32 %v449, %v1741
        %1743 = vmatprep.mubr.bf16.mxu0 %v510
        %1744 = vmatmul.mubr.bf16.gmra.mrb[0].mxu0 %v494
        %v1745 = vpop.f32.mrb[0].mxu0
        %v1746 = vadd.f32 %v445, %v1745
        %v1747 = vpop.f32.mrb[0].mxu0
        %v1748 = vadd.f32 %v449, %v1747
        %v1749 = vpop.f32.mrb[0].mxu0
        %v1750 = vadd.f32 %v445, %v1749
        %v1751 = vpop.f32.mrb[0].mxu0
        %v1752 = vadd.f32 %v449, %v1751
        %1753 = vmatprep.mubr.bf16.mxu0 %v511
        %1754 = vmatmul.mubr.bf16.gmra.mrb[0].mxu0 %v495
        %v1755 = vpop.f32.mrb[0].mxu0
        %v1756 = vadd.f32 %v445, %v1755
        %v1757 = vpop.f32.mrb[0].mxu0
        %v1758 = vadd.f32 %v449, %v1757
        %v1759 = vpop.f32.mrb[0].mxu0
        %v1760 = vadd.f32 %v445, %v1759
        %v1761 = vpop.f32.mrb[0].mxu0
        %v1762 = vadd.f32 %v449, %v1761
        %1763 = vdwg.mxu0
        %1764 = vmatprep.subr.bf16.mxu0 %v1295
        %1765 = vmatpush1.bf16.msra.mxu0 %v1294
        %1766 = vmatprep.subr.bf16.mxu0 %v1305
        %1767 = vmatpush1.bf16.msra.mxu0 %v1304
        %1768 = vmatprep.subr.bf16.mxu0 %v1315
        %1769 = vmatpush1.bf16.msra.mxu0 %v1314
        %1770 = vmatprep.subr.bf16.mxu0 %v1325
        %1771 = vmatpush1.bf16.msra.mxu0 %v1324
        %1772 = vmatprep.subr.bf16.mxu0 0
        %1773 = vmatpush1.bf16.msra.mxu0 0
        %1774 = vmatprep.subr.bf16.mxu0 0
        %1775 = vmatpush1.bf16.msra.mxu0 0
        %1776 = vmatprep.subr.bf16.mxu0 0
        %1777 = vmatpush1.bf16.msra.mxu0 0
        %1778 = vmatprep.subr.bf16.mxu0 0
        %1779 = vmatpush1.bf16.msra.mxu0 0
        %1780 = vmatprep.subr.bf16.mxu0 0
        %1781 = vmatpush1.bf16.msra.mxu0 0
        %1782 = vmatprep.subr.bf16.mxu0 0
        %1783 = vmatpush1.bf16.msra.mxu0 0
        %1784 = vmatprep.subr.bf16.mxu0 0
        %1785 = vmatpush1.bf16.msra.mxu0 0
        %1786 = vmatprep.subr.bf16.mxu0 0
        %1787 = vmatpush1.bf16.msra.mxu0 0
        %1788 = vmatprep.subr.bf16.mxu0 0
        %1789 = vmatpush1.bf16.msra.mxu0 0
        %1790 = vmatprep.subr.bf16.mxu0 0
        %1791 = vmatpush1.bf16.msra.mxu0 0
        %1792 = vmatprep.subr.bf16.mxu0 0
        %1793 = vmatpush1.bf16.msra.mxu0 0
        %1794 = vmatprep.subr.bf16.mxu0 0
        %1795 = vmatpush1.bf16.msra.mxu0 0
        %1796 = vmatprep.mubr.bf16.mxu0 0
        %1797 = vmatmul.mubr.bf16.gmra.mrb[0].mxu0 %v1534
        %v1798 = vpop.f32.mrb[0].mxu0
        %v1799 = vadd.f32 %v1726, %v1798
        %v1800 = vpop.f32.mrb[0].mxu0
        %v1801 = vadd.f32 %v1728, %v1800
        %v1802 = vpop.f32.mrb[0].mxu0
        %v1803 = vadd.f32 %v1730, %v1802
        %v1804 = vpop.f32.mrb[0].mxu0
        %v1805 = vadd.f32 %v1732, %v1804
        %1806 = vmatprep.mubr.bf16.mxu0 0
        %1807 = vmatmul.mubr.bf16.gmra.mrb[0].mxu0 %v1537
        %v1808 = vpop.f32.mrb[0].mxu0
        %v1809 = vadd.f32 %v1736, %v1808
        %v1810 = vpop.f32.mrb[0].mxu0
        %v1811 = vadd.f32 %v1738, %v1810
        %v1812 = vpop.f32.mrb[0].mxu0
        %v1813 = vadd.f32 %v1740, %v1812
        %v1814 = vpop.f32.mrb[0].mxu0
        %v1815 = vadd.f32 %v1742, %v1814
        %1816 = vmatprep.mubr.bf16.mxu0 0
        %1817 = vmatmul.mubr.bf16.gmra.mrb[0].mxu0 %v1540
        %v1818 = vpop.f32.mrb[0].mxu0
        %v1819 = vadd.f32 %v1746, %v1818
        %v1820 = vpop.f32.mrb[0].mxu0
        %v1821 = vadd.f32 %v1748, %v1820
        %v1822 = vpop.f32.mrb[0].mxu0
        %v1823 = vadd.f32 %v1750, %v1822
        %v1824 = vpop.f32.mrb[0].mxu0
        %v1825 = vadd.f32 %v1752, %v1824
        %1826 = vmatprep.mubr.bf16.mxu0 0
        %1827 = vmatmul.mubr.bf16.gmra.mrb[0].mxu0 %v1543
        %v1828 = vpop.f32.mrb[0].mxu0
        %v1829 = vadd.f32 %v1756, %v1828
        %v1830 = vpop.f32.mrb[0].mxu0
        %v1831 = vadd.f32 %v1758, %v1830
        %v1832 = vpop.f32.mrb[0].mxu0
        %v1833 = vadd.f32 %v1760, %v1832
        %v1834 = vpop.f32.mrb[0].mxu0
        %v1835 = vadd.f32 %v1762, %v1834
        %1836 = vdwg.mxu0
        %1837 = vmatprep.subr.bf16.mxu0 %v1137
        %1838 = vmatpush1.bf16.msra.mxu0 %v1136
        %1839 = vmatprep.subr.bf16.mxu0 %v1147
        %1840 = vmatpush1.bf16.msra.mxu0 %v1146
        %1841 = vmatprep.subr.bf16.mxu0 %v1157
        %1842 = vmatpush1.bf16.msra.mxu0 %v1156
        %1843 = vmatprep.subr.bf16.mxu0 %v1167
        %1844 = vmatpush1.bf16.msra.mxu0 %v1166
        %1845 = vmatprep.subr.bf16.mxu0 %v1177
        %1846 = vmatpush1.bf16.msra.mxu0 %v1176
        %1847 = vmatprep.subr.bf16.mxu0 %v1187
        %1848 = vmatpush1.bf16.msra.mxu0 %v1186
        %1849 = vmatprep.subr.bf16.mxu0 %v1197
        %1850 = vmatpush1.bf16.msra.mxu0 %v1196
        %1851 = vmatprep.subr.bf16.mxu0 %v1207
        %1852 = vmatpush1.bf16.msra.mxu0 %v1206
        %1853 = vmatprep.subr.bf16.mxu0 %v1217
        %1854 = vmatpush1.bf16.msra.mxu0 %v1216
        %1855 = vmatprep.subr.bf16.mxu0 %v1227
        %1856 = vmatpush1.bf16.msra.mxu0 %v1226
        %1857 = vmatprep.subr.bf16.mxu0 %v1237
        %1858 = vmatpush1.bf16.msra.mxu0 %v1236
        %1859 = vmatprep.subr.bf16.mxu0 %v1247
        %1860 = vmatpush1.bf16.msra.mxu0 %v1246
        %1861 = vmatprep.subr.bf16.mxu0 %v1257
        %1862 = vmatpush1.bf16.msra.mxu0 %v1256
        %1863 = vmatprep.subr.bf16.mxu0 %v1267
        %1864 = vmatpush1.bf16.msra.mxu0 %v1266
        %1865 = vmatprep.subr.bf16.mxu0 %v1277
        %1866 = vmatpush1.bf16.msra.mxu0 %v1276
        %1867 = vmatprep.subr.bf16.mxu0 %v1287
        %1868 = vmatpush1.bf16.msra.mxu0 %v1286
        %1869 = vmatprep.mubr.bf16.mxu0 %v508
        %1870 = vmatmul.mubr.bf16.gmra.mrb[0].mxu0 %v492
        %v1871 = vpop.f32.mrb[0].mxu0
        %v1872 = vadd.f32 %v453, %v1871
        %v1873 = vpop.f32.mrb[0].mxu0
        %v1874 = vadd.f32 %v457, %v1873
        %v1875 = vpop.f32.mrb[0].mxu0
        %v1876 = vadd.f32 %v453, %v1875
        %v1877 = vpop.f32.mrb[0].mxu0
        %v1878 = vadd.f32 %v457, %v1877
        %1879 = vmatprep.mubr.bf16.mxu0 %v509
        %1880 = vmatmul.mubr.bf16.gmra.mrb[0].mxu0 %v493
        %v1881 = vpop.f32.mrb[0].mxu0
        %v1882 = vadd.f32 %v453, %v1881
        %v1883 = vpop.f32.mrb[0].mxu0
        %v1884 = vadd.f32 %v457, %v1883
        %v1885 = vpop.f32.mrb[0].mxu0
        %v1886 = vadd.f32 %v453, %v1885
        %v1887 = vpop.f32.mrb[0].mxu0
        %v1888 = vadd.f32 %v457, %v1887
        %1889 = vmatprep.mubr.bf16.mxu0 %v510
        %1890 = vmatmul.mubr.bf16.gmra.mrb[0].mxu0 %v494
        %v1891 = vpop.f32.mrb[0].mxu0
        %v1892 = vadd.f32 %v453, %v1891
        %v1893 = vpop.f32.mrb[0].mxu0
        %v1894 = vadd.f32 %v457, %v1893
        %v1895 = vpop.f32.mrb[0].mxu0
        %v1896 = vadd.f32 %v453, %v1895
        %v1897 = vpop.f32.mrb[0].mxu0
        %v1898 = vadd.f32 %v457, %v1897
        %1899 = vmatprep.mubr.bf16.mxu0 %v511
        %1900 = vmatmul.mubr.bf16.gmra.mrb[0].mxu0 %v495
        %v1901 = vpop.f32.mrb[0].mxu0
        %v1902 = vadd.f32 %v453, %v1901
        %v1903 = vpop.f32.mrb[0].mxu0
        %v1904 = vadd.f32 %v457, %v1903
        %v1905 = vpop.f32.mrb[0].mxu0
        %v1906 = vadd.f32 %v453, %v1905
        %v1907 = vpop.f32.mrb[0].mxu0
        %v1908 = vadd.f32 %v457, %v1907
        %1909 = vdwg.mxu0
        %1910 = vmatprep.subr.bf16.mxu0 %v1297
        %1911 = vmatpush1.bf16.msra.mxu0 %v1296
        %1912 = vmatprep.subr.bf16.mxu0 %v1307
        %1913 = vmatpush1.bf16.msra.mxu0 %v1306
        %1914 = vmatprep.subr.bf16.mxu0 %v1317
        %1915 = vmatpush1.bf16.msra.mxu0 %v1316
        %1916 = vmatprep.subr.bf16.mxu0 %v1327
        %1917 = vmatpush1.bf16.msra.mxu0 %v1326
        %1918 = vmatprep.subr.bf16.mxu0 0
        %1919 = vmatpush1.bf16.msra.mxu0 0
        %1920 = vmatprep.subr.bf16.mxu0 0
        %1921 = vmatpush1.bf16.msra.mxu0 0
        %1922 = vmatprep.subr.bf16.mxu0 0
        %1923 = vmatpush1.bf16.msra.mxu0 0
        %1924 = vmatprep.subr.bf16.mxu0 0
        %1925 = vmatpush1.bf16.msra.mxu0 0
        %1926 = vmatprep.subr.bf16.mxu0 0
        %1927 = vmatpush1.bf16.msra.mxu0 0
        %1928 = vmatprep.subr.bf16.mxu0 0
        %1929 = vmatpush1.bf16.msra.mxu0 0
        %1930 = vmatprep.subr.bf16.mxu0 0
        %1931 = vmatpush1.bf16.msra.mxu0 0
        %1932 = vmatprep.subr.bf16.mxu0 0
        %1933 = vmatpush1.bf16.msra.mxu0 0
        %1934 = vmatprep.subr.bf16.mxu0 0
        %1935 = vmatpush1.bf16.msra.mxu0 0
        %1936 = vmatprep.subr.bf16.mxu0 0
        %1937 = vmatpush1.bf16.msra.mxu0 0
        %1938 = vmatprep.subr.bf16.mxu0 0
        %1939 = vmatpush1.bf16.msra.mxu0 0
        %1940 = vmatprep.subr.bf16.mxu0 0
        %1941 = vmatpush1.bf16.msra.mxu0 0
        %1942 = vmatprep.mubr.bf16.mxu0 0
        %1943 = vmatmul.mubr.bf16.gmra.mrb[0].mxu0 %v1534
        %v1944 = vpop.f32.mrb[0].mxu0
        %v1945 = vadd.f32 %v1872, %v1944
        %v1946 = vpop.f32.mrb[0].mxu0
        %v1947 = vadd.f32 %v1874, %v1946
        %v1948 = vpop.f32.mrb[0].mxu0
        %v1949 = vadd.f32 %v1876, %v1948
        %v1950 = vpop.f32.mrb[0].mxu0
        %v1951 = vadd.f32 %v1878, %v1950
        %1952 = vmatprep.mubr.bf16.mxu0 0
        %1953 = vmatmul.mubr.bf16.gmra.mrb[0].mxu0 %v1537
        %v1954 = vpop.f32.mrb[0].mxu0
        %v1955 = vadd.f32 %v1882, %v1954
        %v1956 = vpop.f32.mrb[0].mxu0
        %v1957 = vadd.f32 %v1884, %v1956
        %v1958 = vpop.f32.mrb[0].mxu0
        %v1959 = vadd.f32 %v1886, %v1958
        %v1960 = vpop.f32.mrb[0].mxu0
        %v1961 = vadd.f32 %v1888, %v1960
        %1962 = vmatprep.mubr.bf16.mxu0 0
        %1963 = vmatmul.mubr.bf16.gmra.mrb[0].mxu0 %v1540
        %v1964 = vpop.f32.mrb[0].mxu0
        %v1965 = vadd.f32 %v1892, %v1964
        %v1966 = vpop.f32.mrb[0].mxu0
        %v1967 = vadd.f32 %v1894, %v1966
        %v1968 = vpop.f32.mrb[0].mxu0
        %v1969 = vadd.f32 %v1896, %v1968
        %v1970 = vpop.f32.mrb[0].mxu0
        %v1971 = vadd.f32 %v1898, %v1970
        %1972 = vmatprep.mubr.bf16.mxu0 0
        %1973 = vmatmul.mubr.bf16.gmra.mrb[0].mxu0 %v1543
        %v1974 = vpop.f32.mrb[0].mxu0
        %v1975 = vadd.f32 %v1902, %v1974
        %v1976 = vpop.f32.mrb[0].mxu0
        %v1977 = vadd.f32 %v1904, %v1976
        %v1978 = vpop.f32.mrb[0].mxu0
        %v1979 = vadd.f32 %v1906, %v1978
        %v1980 = vpop.f32.mrb[0].mxu0
        %v1981 = vadd.f32 %v1908, %v1980
        %1982 = vdwg.mxu0
        %1983 = vmatprep.subr.bf16.mxu0 %v1139
        %1984 = vmatpush1.bf16.msra.mxu0 %v1138
        %1985 = vmatprep.subr.bf16.mxu0 %v1149
        %1986 = vmatpush1.bf16.msra.mxu0 %v1148
        %1987 = vmatprep.subr.bf16.mxu0 %v1159
        %1988 = vmatpush1.bf16.msra.mxu0 %v1158
        %1989 = vmatprep.subr.bf16.mxu0 %v1169
        %1990 = vmatpush1.bf16.msra.mxu0 %v1168
        %1991 = vmatprep.subr.bf16.mxu0 %v1179
        %1992 = vmatpush1.bf16.msra.mxu0 %v1178
        %1993 = vmatprep.subr.bf16.mxu0 %v1189
        %1994 = vmatpush1.bf16.msra.mxu0 %v1188
        %1995 = vmatprep.subr.bf16.mxu0 %v1199
        %1996 = vmatpush1.bf16.msra.mxu0 %v1198
        %1997 = vmatprep.subr.bf16.mxu0 %v1209
        %1998 = vmatpush1.bf16.msra.mxu0 %v1208
        %1999 = vmatprep.subr.bf16.mxu0 %v1219
        %2000 = vmatpush1.bf16.msra.mxu0 %v1218
        %2001 = vmatprep.subr.bf16.mxu0 %v1229
        %2002 = vmatpush1.bf16.msra.mxu0 %v1228
        %2003 = vmatprep.subr.bf16.mxu0 %v1239
        %2004 = vmatpush1.bf16.msra.mxu0 %v1238
        %2005 = vmatprep.subr.bf16.mxu0 %v1249
        %2006 = vmatpush1.bf16.msra.mxu0 %v1248
        %2007 = vmatprep.subr.bf16.mxu0 %v1259
        %2008 = vmatpush1.bf16.msra.mxu0 %v1258
        %2009 = vmatprep.subr.bf16.mxu0 %v1269
        %2010 = vmatpush1.bf16.msra.mxu0 %v1268
        %2011 = vmatprep.subr.bf16.mxu0 %v1279
        %2012 = vmatpush1.bf16.msra.mxu0 %v1278
        %2013 = vmatprep.subr.bf16.mxu0 %v1289
        %2014 = vmatpush1.bf16.msra.mxu0 %v1288
        %2015 = vmatprep.mubr.bf16.mxu0 %v508
        %2016 = vmatmul.mubr.bf16.gmra.mrb[0].mxu0 %v492
        %v2017 = vpop.f32.mrb[0].mxu0
        %v2018 = vadd.f32 %v461, %v2017
        %v2019 = vpop.f32.mrb[0].mxu0
        %v2020 = vadd.f32 %v465, %v2019
        %v2021 = vpop.f32.mrb[0].mxu0
        %v2022 = vadd.f32 %v461, %v2021
        %v2023 = vpop.f32.mrb[0].mxu0
        %v2024 = vadd.f32 %v465, %v2023
        %2025 = vmatprep.mubr.bf16.mxu0 %v509
        %2026 = vmatmul.mubr.bf16.gmra.mrb[0].mxu0 %v493
        %v2027 = vpop.f32.mrb[0].mxu0
        %v2028 = vadd.f32 %v461, %v2027
        %v2029 = vpop.f32.mrb[0].mxu0
        %v2030 = vadd.f32 %v465, %v2029
        %v2031 = vpop.f32.mrb[0].mxu0
        %v2032 = vadd.f32 %v461, %v2031
        %v2033 = vpop.f32.mrb[0].mxu0
        %v2034 = vadd.f32 %v465, %v2033
        %2035 = vmatprep.mubr.bf16.mxu0 %v510
        %2036 = vmatmul.mubr.bf16.gmra.mrb[0].mxu0 %v494
        %v2037 = vpop.f32.mrb[0].mxu0
        %v2038 = vadd.f32 %v461, %v2037
        %v2039 = vpop.f32.mrb[0].mxu0
        %v2040 = vadd.f32 %v465, %v2039
        %v2041 = vpop.f32.mrb[0].mxu0
        %v2042 = vadd.f32 %v461, %v2041
        %v2043 = vpop.f32.mrb[0].mxu0
        %v2044 = vadd.f32 %v465, %v2043
        %2045 = vmatprep.mubr.bf16.mxu0 %v511
        %2046 = vmatmul.mubr.bf16.gmra.mrb[0].mxu0 %v495
        %v2047 = vpop.f32.mrb[0].mxu0
        %v2048 = vadd.f32 %v461, %v2047
        %v2049 = vpop.f32.mrb[0].mxu0
        %v2050 = vadd.f32 %v465, %v2049
        %v2051 = vpop.f32.mrb[0].mxu0
        %v2052 = vadd.f32 %v461, %v2051
        %v2053 = vpop.f32.mrb[0].mxu0
        %v2054 = vadd.f32 %v465, %v2053
        %2055 = vdwg.mxu0
        %2056 = vmatprep.subr.bf16.mxu0 %v1299
        %2057 = vmatpush1.bf16.msra.mxu0 %v1298
        %2058 = vmatprep.subr.bf16.mxu0 %v1309
        %2059 = vmatpush1.bf16.msra.mxu0 %v1308
        %2060 = vmatprep.subr.bf16.mxu0 %v1319
        %2061 = vmatpush1.bf16.msra.mxu0 %v1318
        %2062 = vmatprep.subr.bf16.mxu0 %v1329
        %2063 = vmatpush1.bf16.msra.mxu0 %v1328
        %2064 = vmatprep.subr.bf16.mxu0 0
        %2065 = vmatpush1.bf16.msra.mxu0 0
        %2066 = vmatprep.subr.bf16.mxu0 0
        %2067 = vmatpush1.bf16.msra.mxu0 0
        %2068 = vmatprep.subr.bf16.mxu0 0
        %2069 = vmatpush1.bf16.msra.mxu0 0
        %2070 = vmatprep.subr.bf16.mxu0 0
        %2071 = vmatpush1.bf16.msra.mxu0 0
        %2072 = vmatprep.subr.bf16.mxu0 0
        %2073 = vmatpush1.bf16.msra.mxu0 0
        %2074 = vmatprep.subr.bf16.mxu0 0
        %2075 = vmatpush1.bf16.msra.mxu0 0
        %2076 = vmatprep.subr.bf16.mxu0 0
        %2077 = vmatpush1.bf16.msra.mxu0 0
        %2078 = vmatprep.subr.bf16.mxu0 0
        %2079 = vmatpush1.bf16.msra.mxu0 0
        %2080 = vmatprep.subr.bf16.mxu0 0
        %2081 = vmatpush1.bf16.msra.mxu0 0
        %2082 = vmatprep.subr.bf16.mxu0 0
        %2083 = vmatpush1.bf16.msra.mxu0 0
        %2084 = vmatprep.subr.bf16.mxu0 0
        %2085 = vmatpush1.bf16.msra.mxu0 0
        %2086 = vmatprep.subr.bf16.mxu0 0
        %2087 = vmatpush1.bf16.msra.mxu0 0
        %2088 = vmatprep.mubr.bf16.mxu0 0
        %2089 = vmatmul.mubr.bf16.gmra.mrb[0].mxu0 %v1534
        %v2090 = vpop.f32.mrb[0].mxu0
        %v2091 = vadd.f32 %v2018, %v2090
        %v2092 = vpop.f32.mrb[0].mxu0
        %v2093 = vadd.f32 %v2020, %v2092
        %v2094 = vpop.f32.mrb[0].mxu0
        %v2095 = vadd.f32 %v2022, %v2094
        %v2096 = vpop.f32.mrb[0].mxu0
        %v2097 = vadd.f32 %v2024, %v2096
        %2098 = vmatprep.mubr.bf16.mxu0 0
        %2099 = vmatmul.mubr.bf16.gmra.mrb[0].mxu0 %v1537
        %v2100 = vpop.f32.mrb[0].mxu0
        %v2101 = vadd.f32 %v2028, %v2100
        %v2102 = vpop.f32.mrb[0].mxu0
        %v2103 = vadd.f32 %v2030, %v2102
        %v2104 = vpop.f32.mrb[0].mxu0
        %v2105 = vadd.f32 %v2032, %v2104
        %v2106 = vpop.f32.mrb[0].mxu0
        %v2107 = vadd.f32 %v2034, %v2106
        %2108 = vmatprep.mubr.bf16.mxu0 0
        %2109 = vmatmul.mubr.bf16.gmra.mrb[0].mxu0 %v1540
        %v2110 = vpop.f32.mrb[0].mxu0
        %v2111 = vadd.f32 %v2038, %v2110
        %v2112 = vpop.f32.mrb[0].mxu0
        %v2113 = vadd.f32 %v2040, %v2112
        %v2114 = vpop.f32.mrb[0].mxu0
        %v2115 = vadd.f32 %v2042, %v2114
        %v2116 = vpop.f32.mrb[0].mxu0
        %v2117 = vadd.f32 %v2044, %v2116
        %2118 = vmatprep.mubr.bf16.mxu0 0
        %2119 = vmatmul.mubr.bf16.gmra.mrb[0].mxu0 %v1543
        %v2120 = vpop.f32.mrb[0].mxu0
        %v2121 = vadd.f32 %v2048, %v2120
        %v2122 = vpop.f32.mrb[0].mxu0
        %v2123 = vadd.f32 %v2050, %v2122
        %v2124 = vpop.f32.mrb[0].mxu0
        %v2125 = vadd.f32 %v2052, %v2124
        %v2126 = vpop.f32.mrb[0].mxu0
        %v2127 = vadd.f32 %v2054, %v2126
        %2128 = vdwg.mxu0
        %2129 = vmatprep.subr.bf16.mxu0 %v1141
        %2130 = vmatpush1.bf16.msra.mxu0 %v1140
        %2131 = vmatprep.subr.bf16.mxu0 %v1151
        %2132 = vmatpush1.bf16.msra.mxu0 %v1150
        %2133 = vmatprep.subr.bf16.mxu0 %v1161
        %2134 = vmatpush1.bf16.msra.mxu0 %v1160
        %2135 = vmatprep.subr.bf16.mxu0 %v1171
        %2136 = vmatpush1.bf16.msra.mxu0 %v1170
        %2137 = vmatprep.subr.bf16.mxu0 %v1181
        %2138 = vmatpush1.bf16.msra.mxu0 %v1180
        %2139 = vmatprep.subr.bf16.mxu0 %v1191
        %2140 = vmatpush1.bf16.msra.mxu0 %v1190
        %2141 = vmatprep.subr.bf16.mxu0 %v1201
        %2142 = vmatpush1.bf16.msra.mxu0 %v1200
        %2143 = vmatprep.subr.bf16.mxu0 %v1211
        %2144 = vmatpush1.bf16.msra.mxu0 %v1210
        %2145 = vmatprep.subr.bf16.mxu0 %v1221
        %2146 = vmatpush1.bf16.msra.mxu0 %v1220
        %2147 = vmatprep.subr.bf16.mxu0 %v1231
        %2148 = vmatpush1.bf16.msra.mxu0 %v1230
        %2149 = vmatprep.subr.bf16.mxu0 %v1241
        %2150 = vmatpush1.bf16.msra.mxu0 %v1240
        %2151 = vmatprep.subr.bf16.mxu0 %v1251
        %2152 = vmatpush1.bf16.msra.mxu0 %v1250
        %2153 = vmatprep.subr.bf16.mxu0 %v1261
        %2154 = vmatpush1.bf16.msra.mxu0 %v1260
        %2155 = vmatprep.subr.bf16.mxu0 %v1271
        %2156 = vmatpush1.bf16.msra.mxu0 %v1270
        %2157 = vmatprep.subr.bf16.mxu0 %v1281
        %2158 = vmatpush1.bf16.msra.mxu0 %v1280
        %2159 = vmatprep.subr.bf16.mxu0 %v1291
        %2160 = vmatpush1.bf16.msra.mxu0 %v1290
        %2161 = vmatprep.mubr.bf16.mxu0 %v508
        %2162 = vmatmul.mubr.bf16.gmra.mrb[0].mxu0 %v492
        %v2163 = vpop.f32.mrb[0].mxu0
        %v2164 = vadd.f32 %v469, %v2163
        %v2165 = vpop.f32.mrb[0].mxu0
        %v2166 = vadd.f32 %v473, %v2165
        %v2167 = vpop.f32.mrb[0].mxu0
        %v2168 = vadd.f32 %v469, %v2167
        %v2169 = vpop.f32.mrb[0].mxu0
        %v2170 = vadd.f32 %v473, %v2169
        %2171 = vmatprep.mubr.bf16.mxu0 %v509
        %2172 = vmatmul.mubr.bf16.gmra.mrb[0].mxu0 %v493
        %v2173 = vpop.f32.mrb[0].mxu0
        %v2174 = vadd.f32 %v469, %v2173
        %v2175 = vpop.f32.mrb[0].mxu0
        %v2176 = vadd.f32 %v473, %v2175
        %v2177 = vpop.f32.mrb[0].mxu0
        %v2178 = vadd.f32 %v469, %v2177
        %v2179 = vpop.f32.mrb[0].mxu0
        %v2180 = vadd.f32 %v473, %v2179
        %2181 = vmatprep.mubr.bf16.mxu0 %v510
        %2182 = vmatmul.mubr.bf16.gmra.mrb[0].mxu0 %v494
        %v2183 = vpop.f32.mrb[0].mxu0
        %v2184 = vadd.f32 %v469, %v2183
        %v2185 = vpop.f32.mrb[0].mxu0
        %v2186 = vadd.f32 %v473, %v2185
        %v2187 = vpop.f32.mrb[0].mxu0
        %v2188 = vadd.f32 %v469, %v2187
        %v2189 = vpop.f32.mrb[0].mxu0
        %v2190 = vadd.f32 %v473, %v2189
        %2191 = vmatprep.mubr.bf16.mxu0 %v511
        %2192 = vmatmul.mubr.bf16.gmra.mrb[0].mxu0 %v495
        %v2193 = vpop.f32.mrb[0].mxu0
        %v2194 = vadd.f32 %v469, %v2193
        %v2195 = vpop.f32.mrb[0].mxu0
        %v2196 = vadd.f32 %v473, %v2195
        %v2197 = vpop.f32.mrb[0].mxu0
        %v2198 = vadd.f32 %v469, %v2197
        %v2199 = vpop.f32.mrb[0].mxu0
        %v2200 = vadd.f32 %v473, %v2199
        %2201 = vdwg.mxu0
        %2202 = vmatprep.subr.bf16.mxu0 %v1301
        %2203 = vmatpush1.bf16.msra.mxu0 %v1300
        %2204 = vmatprep.subr.bf16.mxu0 %v1311
        %2205 = vmatpush1.bf16.msra.mxu0 %v1310
        %2206 = vmatprep.subr.bf16.mxu0 %v1321
        %2207 = vmatpush1.bf16.msra.mxu0 %v1320
        %2208 = vmatprep.subr.bf16.mxu0 %v1331
        %2209 = vmatpush1.bf16.msra.mxu0 %v1330
        %2210 = vmatprep.subr.bf16.mxu0 0
        %2211 = vmatpush1.bf16.msra.mxu0 0
        %2212 = vmatprep.subr.bf16.mxu0 0
        %2213 = vmatpush1.bf16.msra.mxu0 0
        %2214 = vmatprep.subr.bf16.mxu0 0
        %2215 = vmatpush1.bf16.msra.mxu0 0
        %2216 = vmatprep.subr.bf16.mxu0 0
        %2217 = vmatpush1.bf16.msra.mxu0 0
        %2218 = vmatprep.subr.bf16.mxu0 0
        %2219 = vmatpush1.bf16.msra.mxu0 0
        %2220 = vmatprep.subr.bf16.mxu0 0
        %2221 = vmatpush1.bf16.msra.mxu0 0
        %2222 = vmatprep.subr.bf16.mxu0 0
        %2223 = vmatpush1.bf16.msra.mxu0 0
        %2224 = vmatprep.subr.bf16.mxu0 0
        %2225 = vmatpush1.bf16.msra.mxu0 0
        %2226 = vmatprep.subr.bf16.mxu0 0
        %2227 = vmatpush1.bf16.msra.mxu0 0
        %2228 = vmatprep.subr.bf16.mxu0 0
        %2229 = vmatpush1.bf16.msra.mxu0 0
        %2230 = vmatprep.subr.bf16.mxu0 0
        %2231 = vmatpush1.bf16.msra.mxu0 0
        %2232 = vmatprep.subr.bf16.mxu0 0
        %2233 = vmatpush1.bf16.msra.mxu0 0
        %2234 = vmatprep.mubr.bf16.mxu0 0
        %2235 = vmatmul.mubr.bf16.gmra.mrb[0].mxu0 %v1534
        %v2236 = vpop.f32.mrb[0].mxu0
        %v2237 = vadd.f32 %v2164, %v2236
        %v2238 = vpop.f32.mrb[0].mxu0
        %v2239 = vadd.f32 %v2166, %v2238
        %v2240 = vpop.f32.mrb[0].mxu0
        %v2241 = vadd.f32 %v2168, %v2240
        %v2242 = vpop.f32.mrb[0].mxu0
        %v2243 = vadd.f32 %v2170, %v2242
        %2244 = vmatprep.mubr.bf16.mxu0 0
        %2245 = vmatmul.mubr.bf16.gmra.mrb[0].mxu0 %v1537
        %v2246 = vpop.f32.mrb[0].mxu0
        %v2247 = vadd.f32 %v2174, %v2246
        %v2248 = vpop.f32.mrb[0].mxu0
        %v2249 = vadd.f32 %v2176, %v2248
        %v2250 = vpop.f32.mrb[0].mxu0
        %v2251 = vadd.f32 %v2178, %v2250
        %v2252 = vpop.f32.mrb[0].mxu0
        %v2253 = vadd.f32 %v2180, %v2252
        %2254 = vmatprep.mubr.bf16.mxu0 0
        %2255 = vmatmul.mubr.bf16.gmra.mrb[0].mxu0 %v1540
        %v2256 = vpop.f32.mrb[0].mxu0
        %v2257 = vadd.f32 %v2184, %v2256
        %v2258 = vpop.f32.mrb[0].mxu0
        %v2259 = vadd.f32 %v2186, %v2258
        %v2260 = vpop.f32.mrb[0].mxu0
        %v2261 = vadd.f32 %v2188, %v2260
        %v2262 = vpop.f32.mrb[0].mxu0
        %v2263 = vadd.f32 %v2190, %v2262
        %2264 = vmatprep.mubr.bf16.mxu0 0
        %2265 = vmatmul.mubr.bf16.gmra.mrb[0].mxu0 %v1543
        %v2266 = vpop.f32.mrb[0].mxu0
        %v2267 = vadd.f32 %v2194, %v2266
        %v2268 = vpop.f32.mrb[0].mxu0
        %v2269 = vadd.f32 %v2196, %v2268
        %v2270 = vpop.f32.mrb[0].mxu0
        %v2271 = vadd.f32 %v2198, %v2270
        %v2272 = vpop.f32.mrb[0].mxu0
        %v2273 = vadd.f32 %v2200, %v2272
        %2274 = vdwg.mxu0
        %v2275 = vmax.f32 %v1653, 0.0
        %v2276 = vmax.f32 %v1655, 0.0
        %v2277 = vmax.f32 %v1799, 0.0
        %v2278 = vmax.f32 %v1801, 0.0
        %v2279 = vmax.f32 %v1945, 0.0
        %v2280 = vmax.f32 %v1947, 0.0
        %v2281 = vmax.f32 %v2091, 0.0
        %v2282 = vmax.f32 %v2093, 0.0
        %v2283 = vmax.f32 %v2237, 0.0
        %v2284 = vmax.f32 %v2239, 0.0
        %v2285 = vmax.f32 %v1657, 0.0
        %v2286 = vmax.f32 %v1659, 0.0
        %v2287 = vmax.f32 %v1803, 0.0
        %v2288 = vmax.f32 %v1805, 0.0
        %v2289 = vmax.f32 %v1949, 0.0
        %v2290 = vmax.f32 %v1951, 0.0
        %v2291 = vmax.f32 %v2095, 0.0
        %v2292 = vmax.f32 %v2097, 0.0
        %v2293 = vmax.f32 %v2241, 0.0
        %v2294 = vmax.f32 %v2243, 0.0
        %v2295 = vmax.f32 %v1663, 0.0
        %v2296 = vmax.f32 %v1665, 0.0
        %v2297 = vmax.f32 %v1809, 0.0
        %v2298 = vmax.f32 %v1811, 0.0
        %v2299 = vmax.f32 %v1955, 0.0
        %v2300 = vmax.f32 %v1957, 0.0
        %v2301 = vmax.f32 %v2101, 0.0
        %v2302 = vmax.f32 %v2103, 0.0
        %v2303 = vmax.f32 %v2247, 0.0
        %v2304 = vmax.f32 %v2249, 0.0
        %v2305 = vmax.f32 %v1667, 0.0
        %v2306 = vmax.f32 %v1669, 0.0
        %v2307 = vmax.f32 %v1813, 0.0
        %v2308 = vmax.f32 %v1815, 0.0
        %v2309 = vmax.f32 %v1959, 0.0
        %v2310 = vmax.f32 %v1961, 0.0
        %v2311 = vmax.f32 %v2105, 0.0
        %v2312 = vmax.f32 %v2107, 0.0
        %v2313 = vmax.f32 %v2251, 0.0
        %v2314 = vmax.f32 %v2253, 0.0
        %v2315 = vmax.f32 %v1673, 0.0
        %v2316 = vmax.f32 %v1675, 0.0
        %v2317 = vmax.f32 %v1819, 0.0
        %v2318 = vmax.f32 %v1821, 0.0
        %v2319 = vmax.f32 %v1965, 0.0
        %v2320 = vmax.f32 %v1967, 0.0
        %v2321 = vmax.f32 %v2111, 0.0
        %v2322 = vmax.f32 %v2113, 0.0
        %v2323 = vmax.f32 %v2257, 0.0
        %v2324 = vmax.f32 %v2259, 0.0
        %v2325 = vmax.f32 %v1677, 0.0
        %v2326 = vmax.f32 %v1679, 0.0
        %v2327 = vmax.f32 %v1823, 0.0
        %v2328 = vmax.f32 %v1825, 0.0
        %v2329 = vmax.f32 %v1969, 0.0
        %v2330 = vmax.f32 %v1971, 0.0
        %v2331 = vmax.f32 %v2115, 0.0
        %v2332 = vmax.f32 %v2117, 0.0
        %v2333 = vmax.f32 %v2261, 0.0
        %v2334 = vmax.f32 %v2263, 0.0
        %v2335 = vmax.f32 %v1683, 0.0
        %v2336 = vmax.f32 %v1685, 0.0
        %v2337 = vmax.f32 %v1829, 0.0
        %v2338 = vmax.f32 %v1831, 0.0
        %v2339 = vmax.f32 %v1975, 0.0
        %v2340 = vmax.f32 %v1977, 0.0
        %v2341 = vmax.f32 %v2121, 0.0
        %v2342 = vmax.f32 %v2123, 0.0
        %v2343 = vmax.f32 %v2267, 0.0
        %v2344 = vmax.f32 %v2269, 0.0
        %v2345 = vmax.f32 %v1687, 0.0
        %v2346 = vmax.f32 %v1689, 0.0
        %v2347 = vmax.f32 %v1833, 0.0
        %v2348 = vmax.f32 %v1835, 0.0
        %v2349 = vmax.f32 %v1979, 0.0
        %v2350 = vmax.f32 %v1981, 0.0
        %v2351 = vmax.f32 %v2125, 0.0
        %v2352 = vmax.f32 %v2127, 0.0
        %v2353 = vmax.f32 %v2271, 0.0
        %v2354 = vmax.f32 %v2273, 0.0
        %v2355 = vmin.f32 %v2275, 6.0
        %v2356 = vmin.f32 %v2276, 6.0
        %v2357 = vmin.f32 %v2277, 6.0
        %v2358 = vmin.f32 %v2278, 6.0
        %v2359 = vmin.f32 %v2279, 6.0
        %v2360 = vmin.f32 %v2280, 6.0
        %v2361 = vmin.f32 %v2281, 6.0
        %v2362 = vmin.f32 %v2282, 6.0
        %v2363 = vmin.f32 %v2283, 6.0
        %v2364 = vmin.f32 %v2284, 6.0
        %v2365 = vmin.f32 %v2285, 6.0
        %v2366 = vmin.f32 %v2286, 6.0
        %v2367 = vmin.f32 %v2287, 6.0
        %v2368 = vmin.f32 %v2288, 6.0
        %v2369 = vmin.f32 %v2289, 6.0
        %v2370 = vmin.f32 %v2290, 6.0
        %v2371 = vmin.f32 %v2291, 6.0
        %v2372 = vmin.f32 %v2292, 6.0
        %v2373 = vmin.f32 %v2293, 6.0
        %v2374 = vmin.f32 %v2294, 6.0
        %v2375 = vmin.f32 %v2295, 6.0
        %v2376 = vmin.f32 %v2296, 6.0
        %v2377 = vmin.f32 %v2297, 6.0
        %v2378 = vmin.f32 %v2298, 6.0
        %v2379 = vmin.f32 %v2299, 6.0
        %v2380 = vmin.f32 %v2300, 6.0
        %v2381 = vmin.f32 %v2301, 6.0
        %v2382 = vmin.f32 %v2302, 6.0
        %v2383 = vmin.f32 %v2303, 6.0
        %v2384 = vmin.f32 %v2304, 6.0
        %v2385 = vmin.f32 %v2305, 6.0
        %v2386 = vmin.f32 %v2306, 6.0
        %v2387 = vmin.f32 %v2307, 6.0
        %v2388 = vmin.f32 %v2308, 6.0
        %v2389 = vmin.f32 %v2309, 6.0
        %v2390 = vmin.f32 %v2310, 6.0
        %v2391 = vmin.f32 %v2311, 6.0
        %v2392 = vmin.f32 %v2312, 6.0
        %v2393 = vmin.f32 %v2313, 6.0
        %v2394 = vmin.f32 %v2314, 6.0
        %v2395 = vmin.f32 %v2315, 6.0
        %v2396 = vmin.f32 %v2316, 6.0
        %v2397 = vmin.f32 %v2317, 6.0
        %v2398 = vmin.f32 %v2318, 6.0
        %v2399 = vmin.f32 %v2319, 6.0
        %v2400 = vmin.f32 %v2320, 6.0
        %v2401 = vmin.f32 %v2321, 6.0
        %v2402 = vmin.f32 %v2322, 6.0
        %v2403 = vmin.f32 %v2323, 6.0
        %v2404 = vmin.f32 %v2324, 6.0
        %v2405 = vmin.f32 %v2325, 6.0
        %v2406 = vmin.f32 %v2326, 6.0
        %v2407 = vmin.f32 %v2327, 6.0
        %v2408 = vmin.f32 %v2328, 6.0
        %v2409 = vmin.f32 %v2329, 6.0
        %v2410 = vmin.f32 %v2330, 6.0
        %v2411 = vmin.f32 %v2331, 6.0
        %v2412 = vmin.f32 %v2332, 6.0
        %v2413 = vmin.f32 %v2333, 6.0
        %v2414 = vmin.f32 %v2334, 6.0
        %v2415 = vmin.f32 %v2335, 6.0
        %v2416 = vmin.f32 %v2336, 6.0
        %v2417 = vmin.f32 %v2337, 6.0
        %v2418 = vmin.f32 %v2338, 6.0
        %v2419 = vmin.f32 %v2339, 6.0
        %v2420 = vmin.f32 %v2340, 6.0
        %v2421 = vmin.f32 %v2341, 6.0
        %v2422 = vmin.f32 %v2342, 6.0
        %v2423 = vmin.f32 %v2343, 6.0
        %v2424 = vmin.f32 %v2344, 6.0
        %v2425 = vmin.f32 %v2345, 6.0
        %v2426 = vmin.f32 %v2346, 6.0
        %v2427 = vmin.f32 %v2347, 6.0
        %v2428 = vmin.f32 %v2348, 6.0
        %v2429 = vmin.f32 %v2349, 6.0
        %v2430 = vmin.f32 %v2350, 6.0
        %v2431 = vmin.f32 %v2351, 6.0
        %v2432 = vmin.f32 %v2352, 6.0
        %v2433 = vmin.f32 %v2353, 6.0
        %v2434 = vmin.f32 %v2354, 6.0
        %v2435 = vadd.f32 %v2355, %v2365
        %v2436 = vadd.f32 %v2435, %v2375
        %v2437 = vadd.f32 %v2436, %v2385
        %v2438 = vadd.f32 %v2437, %v2395
        %v2439 = vadd.f32 %v2438, %v2405
        %v2440 = vadd.f32 %v2439, %v2415
        %v2441 = vadd.f32 %v2440, %v2425
        %v2442 = vrot.slane %v2441, 4
        %v2443 = vadd.f32 %v2441, %v2442
        %v2444 = vrot.slane %v2443, 2
        %v2445 = vadd.f32 %v2443, %v2444
        %v2446 = vrot.slane %v2445, 1
        %v2447 = vadd.f32 %v2445, %v2446
        %v2448 = vadd.f32 %v2356, %v2366
        %v2449 = vadd.f32 %v2448, %v2376
        %v2450 = vadd.f32 %v2449, %v2386
        %v2451 = vadd.f32 %v2450, %v2396
        %v2452 = vadd.f32 %v2451, %v2406
        %v2453 = vadd.f32 %v2452, %v2416
        %v2454 = vadd.f32 %v2453, %v2426
        %v2455 = vrot.slane %v2454, 4
        %v2456 = vadd.f32 %v2454, %v2455
        %v2457 = vrot.slane %v2456, 2
        %v2458 = vadd.f32 %v2456, %v2457
        %v2459 = vrot.slane %v2458, 1
        %v2460 = vadd.f32 %v2458, %v2459
        %v2461 = vadd.f32 %v2357, %v2367
        %v2462 = vadd.f32 %v2461, %v2377
        %v2463 = vadd.f32 %v2462, %v2387
        %v2464 = vadd.f32 %v2463, %v2397
        %v2465 = vadd.f32 %v2464, %v2407
        %v2466 = vadd.f32 %v2465, %v2417
        %v2467 = vadd.f32 %v2466, %v2427
        %v2468 = vrot.slane %v2467, 4
        %v2469 = vadd.f32 %v2467, %v2468
        %v2470 = vrot.slane %v2469, 2
        %v2471 = vadd.f32 %v2469, %v2470
        %v2472 = vrot.slane %v2471, 1
        %v2473 = vadd.f32 %v2471, %v2472
        %v2474 = vadd.f32 %v2358, %v2368
        %v2475 = vadd.f32 %v2474, %v2378
        %v2476 = vadd.f32 %v2475, %v2388
        %v2477 = vadd.f32 %v2476, %v2398
        %v2478 = vadd.f32 %v2477, %v2408
        %v2479 = vadd.f32 %v2478, %v2418
        %v2480 = vadd.f32 %v2479, %v2428
        %v2481 = vrot.slane %v2480, 4
        %v2482 = vadd.f32 %v2480, %v2481
        %v2483 = vrot.slane %v2482, 2
        %v2484 = vadd.f32 %v2482, %v2483
        %v2485 = vrot.slane %v2484, 1
        %v2486 = vadd.f32 %v2484, %v2485
        %v2487 = vadd.f32 %v2359, %v2369
        %v2488 = vadd.f32 %v2487, %v2379
        %v2489 = vadd.f32 %v2488, %v2389
        %v2490 = vadd.f32 %v2489, %v2399
        %v2491 = vadd.f32 %v2490, %v2409
        %v2492 = vadd.f32 %v2491, %v2419
        %v2493 = vadd.f32 %v2492, %v2429
        %v2494 = vrot.slane %v2493, 4
        %v2495 = vadd.f32 %v2493, %v2494
        %v2496 = vrot.slane %v2495, 2
        %v2497 = vadd.f32 %v2495, %v2496
        %v2498 = vrot.slane %v2497, 1
        %v2499 = vadd.f32 %v2497, %v2498
        %v2500 = vadd.f32 %v2360, %v2370
        %v2501 = vadd.f32 %v2500, %v2380
        %v2502 = vadd.f32 %v2501, %v2390
        %v2503 = vadd.f32 %v2502, %v2400
        %v2504 = vadd.f32 %v2503, %v2410
        %v2505 = vadd.f32 %v2504, %v2420
        %v2506 = vadd.f32 %v2505, %v2430
        %v2507 = vrot.slane %v2506, 4
        %v2508 = vadd.f32 %v2506, %v2507
        %v2509 = vrot.slane %v2508, 2
        %v2510 = vadd.f32 %v2508, %v2509
        %v2511 = vrot.slane %v2510, 1
        %v2512 = vadd.f32 %v2510, %v2511
        %v2513 = vadd.f32 %v2361, %v2371
        %v2514 = vadd.f32 %v2513, %v2381
        %v2515 = vadd.f32 %v2514, %v2391
        %v2516 = vadd.f32 %v2515, %v2401
        %v2517 = vadd.f32 %v2516, %v2411
        %v2518 = vadd.f32 %v2517, %v2421
        %v2519 = vadd.f32 %v2518, %v2431
        %v2520 = vrot.slane %v2519, 4
        %v2521 = vadd.f32 %v2519, %v2520
        %v2522 = vrot.slane %v2521, 2
        %v2523 = vadd.f32 %v2521, %v2522
        %v2524 = vrot.slane %v2523, 1
        %v2525 = vadd.f32 %v2523, %v2524
        %v2526 = vadd.f32 %v2362, %v2372
        %v2527 = vadd.f32 %v2526, %v2382
        %v2528 = vadd.f32 %v2527, %v2392
        %v2529 = vadd.f32 %v2528, %v2402
        %v2530 = vadd.f32 %v2529, %v2412
        %v2531 = vadd.f32 %v2530, %v2422
        %v2532 = vadd.f32 %v2531, %v2432
        %v2533 = vrot.slane %v2532, 4
        %v2534 = vadd.f32 %v2532, %v2533
        %v2535 = vrot.slane %v2534, 2
        %v2536 = vadd.f32 %v2534, %v2535
        %v2537 = vrot.slane %v2536, 1
        %v2538 = vadd.f32 %v2536, %v2537
        %v2539 = vadd.f32 %v2363, %v2373
        %v2540 = vadd.f32 %v2539, %v2383
        %v2541 = vadd.f32 %v2540, %v2393
        %v2542 = vadd.f32 %v2541, %v2403
        %v2543 = vadd.f32 %v2542, %v2413
        %v2544 = vadd.f32 %v2543, %v2423
        %v2545 = vadd.f32 %v2544, %v2433
        %v2546 = vrot.slane %v2545, 4
        %v2547 = vadd.f32 %v2545, %v2546
        %v2548 = vrot.slane %v2547, 2
        %v2549 = vadd.f32 %v2547, %v2548
        %v2550 = vrot.slane %v2549, 1
        %v2551 = vadd.f32 %v2549, %v2550
        %v2552 = vadd.f32 %v2364, %v2374
        %v2553 = vadd.f32 %v2552, %v2384
        %v2554 = vadd.f32 %v2553, %v2394
        %v2555 = vadd.f32 %v2554, %v2404
        %v2556 = vadd.f32 %v2555, %v2414
        %v2557 = vadd.f32 %v2556, %v2424
        %v2558 = vadd.f32 %v2557, %v2434
        %v2559 = vrot.slane %v2558, 4
        %v2560 = vadd.f32 %v2558, %v2559
        %v2561 = vrot.slane %v2560, 2
        %v2562 = vadd.f32 %v2560, %v2561
        %v2563 = vrot.slane %v2562, 1
        %v2564 = vadd.f32 %v2562, %v2563
        %v2565 = vmul.f32 %v2447, 0.015625
        %v2566 = vmul.f32 %v2460, 0.015625
        %v2567 = vmul.f32 %v2473, 0.015625
        %v2568 = vmul.f32 %v2486, 0.015625
        %v2569 = vmul.f32 %v2499, 0.015625
        %v2570 = vmul.f32 %v2512, 0.015625
        %v2571 = vmul.f32 %v2525, 0.015625
        %v2572 = vmul.f32 %v2538, 0.015625
        %v2573 = vmul.f32 %v2551, 0.015625
        %v2574 = vmul.f32 %v2564, 0.015625
        %v2585 = vcombine.low %v2565, %v2566
        %v2586 = vcombine.low %v2567, %v2568
        %v2587 = vcombine.low %v2569, %v2570
        %v2588 = vcombine.low %v2571, %v2572
        %v2590 = vunpack.c.l.s4 1966171168
        %v2591 = vunpack.c.0.s8 %v2590
        %v2592 = vlaneseq
        %v2593 = vshrl.u32 %v2592, 7
        %v2594 = vsub.s32 %v2591, %v2593
        %v2595 = vrot.slane %v2585, %v2594
        %v2597 = vunpack.c.l.s4 1966171168
        %v2598 = vunpack.c.0.s8 %v2597
        %v2599 = vlaneseq
        %v2600 = vshrl.u32 %v2599, 7
        %v2601 = vsub.s32 %v2598, %v2600
        %v2602 = vrot.slane %v2586, %v2601
        %v2604 = vunpack.c.l.s4 1966171168
        %v2605 = vunpack.c.0.s8 %v2604
        %v2606 = vlaneseq
        %v2607 = vshrl.u32 %v2606, 7
        %v2608 = vsub.s32 %v2605, %v2607
        %v2609 = vrot.slane %v2587, %v2608
        %v2611 = vunpack.c.l.s4 1966171168
        %v2612 = vunpack.c.0.s8 %v2611
        %v2613 = vlaneseq
        %v2614 = vshrl.u32 %v2613, 7
        %v2615 = vsub.s32 %v2612, %v2614
        %v2616 = vrot.slane %v2588, %v2615
        %v2617 = vcombine.low %v2595, %v2602
        %v2618 = vcombine.low %v2609, %v2616
        %v2620 = vunpack.c.l.s4 1966171168
        %v2621 = vunpack.c.0.s8 %v2620
        %v2622 = vlaneseq
        %v2623 = vshrl.u32 %v2622, 7
        %v2624 = vsub.s32 %v2621, %v2623
        %v2625 = vrot.slane %v2617, %v2624
        %v2627 = vunpack.c.l.s4 1966171168
        %v2628 = vunpack.c.0.s8 %v2627
        %v2629 = vlaneseq
        %v2630 = vshrl.u32 %v2629, 7
        %v2631 = vsub.s32 %v2628, %v2630
        %v2632 = vrot.slane %v2618, %v2631
        %v2633 = vcombine.low %v2625, %v2632
        %v2634 = vcombine.low %v2573, %v2574
        %v2636 = vunpack.c.l.s4 1966171168
        %v2637 = vunpack.c.0.s8 %v2636
        %v2638 = vlaneseq
        %v2639 = vshrl.u32 %v2638, 7
        %v2640 = vsub.s32 %v2637, %v2639
        %v2641 = vrot.slane %v2634, %v2640
        %v2643 = vunpack.c.l.s4 1966171168
        %v2644 = vunpack.c.0.s8 %v2643
        %v2645 = vlaneseq
        %v2646 = vshrl.u32 %v2645, 7
        %v2647 = vsub.s32 %v2644, %v2646
        %v2648 = vrot.slane %v2641, %v2647
        %2651 = vst [vmem:[%s163] sm:$0xff] %v2633
        %v2652 = vlaneseq
        %vm2653 = vcmp.ge.s32.totalorder %v2652, 0
        %vm2654 = vcmp.lt.s32.totalorder %v2652, 256
        %vm2655 = vmand %vm2653, %vm2654
        %2656 = vst.msk [vmem:[%s163 + $0x8] sm:$0x3] %vm2655, %v2648
        %s2657 = sand.u32 %s93, 1
        %s2658 = scalar_lea.sflag [#allocation3], %s2657
        %s2659 = sand.u32 %s93, 1
        %s2660 = smul.addr %s2659, 10
        %s2661 = scalar_lea.vmem [#allocation2], %s2660
        // Predicated region
        $region33: #{auxiliary_classifier_forward.1} parent=31 // pred_check
          %p2662 = pneg %p103
        $region34: #{auxiliary_classifier_forward.1} parent=31 // pred_check_branch
          %2664 = sbr.rel (%p2662) target = $region36
        $region35: #{auxiliary_classifier_forward.1} parent=31 // pred_region
          %s2666 = ssub.s32 160, 160
          %2667 = vsyncadd %s2658, %s2666
          %s2668 = smul.addr %s17, 10
          %s2669 = smul.addr %s2668, 16
          %s2670 = scalar_lea.hbm %s3, %s2669
          %s2672 = sshll.u32 %s2661, 4
          %s2673 = int_to_ptr.vmem [resolvable:$true] %s2672
          %2675 = dma.vmem_to_hbm [thread:$0]  %s2673, 160, %s2670, %s2658
        $region36: #{auxiliary_classifier_forward.1} parent=31 // pred_fallthru
          _
      $region32: #{auxiliary_classifier_forward.1} parent=5 // pred_fallthru
        _
      %p2676 = scmp.le.s32.totalorder 2, %s12
      // Predicated region
      $region37: #{auxiliary_classifier_forward.1} parent=5 // pred_check
        %p2677 = pneg %p2676
      $region38: #{auxiliary_classifier_forward.1} parent=5 // pred_check_branch
        %2679 = sbr.rel (%p2677) target = $region40
      $region39: #{auxiliary_classifier_forward.1} parent=5 // pred_region
        %s2680 = ssub.s32 %s12, 2
        // Predicated region
        $region41: #{auxiliary_classifier_forward.1} parent=39 // pred_check
          %p2681 = pneg %p109
        $region42: #{auxiliary_classifier_forward.1} parent=39 // pred_check_branch
          %2683 = sbr.rel (%p2681) target = $region44
        $region43: #{auxiliary_classifier_forward.1} parent=39 // pred_region
          %s2684 = sand.u32 %s94, 1
          %s2685 = scalar_lea.sflag [#allocation3], %s2684
          %s2686 = sand.u32 %s94, 1
          %s2687 = smul.addr %s2686, 10
          %s2688 = scalar_lea.vmem [#allocation2], %s2687
          %2689 = dma.done %s2685, 160
        $region44: #{auxiliary_classifier_forward.1} parent=39 // pred_fallthru
          _
      $region40: #{auxiliary_classifier_forward.1} parent=5 // pred_fallthru
        _
    $region6: #{auxiliary_classifier_forward.1} parent=1 // loop_footer
      %s16 = sadd.s32 1, %s12
    $region7: #{auxiliary_classifier_forward.1} parent=1 // loop_footer_branch
      %11 = sbr.rel target = $region3
    $region8: #{auxiliary_classifier_forward.1} parent=1 // loop_exit
      _
    %2690 = vsyncpa [#allocation3], 1
    %s2691 = scalar_lea.sflag [#allocation3], 1
    %2692 = vsyncpa %s2691, 1

</llo_original>
